<compile_context>
chip_gen: v5e
topology: v5e:2x2
jax: 0.10.0
libtpu: 0.0.40
codegen_flags: <defaults>
</compile_context>

<pallas_src>
import functools

import jax
import jax.numpy as jnp
from jax import lax
from jax.experimental import pallas as pl
from jax.experimental.pallas import tpu as pltpu


# >= the default scoped VMEM limit on all generations (16/32 MiB) and <= the
# 64 MiB physical VMEM of a v7x TensorCore.  Re-derive if tiles are grown.
_VMEM_LIMIT_BYTES = 64 * 1024 * 1024


def _pick_tile(dim, pref, align):
    """Largest `align`-aligned divisor of `dim` that is <= `pref`.

    Never balloons to the full dimension when `dim > pref` unless no aligned
    divisor exists (pathological, non-128-multiple shapes).
    """
    if dim <= pref:
        return dim                     # full extent -> always a legal block
    t = (pref // align) * align
    while t >= align:
        if dim % t == 0:
            return t
        t -= align
    # TODO(synk): switch to a cdiv grid + masked partial last tile for shapes
    # with no aligned divisor; full extent kept only as a last resort.
    return dim


# ----------------------------------------------------------------------------
# Kernel 1: tiled matmul + bias (synthetic encoder).  K axis innermost, f32
# VMEM accumulator, init/finalize via pl.when.  LHS cast to the weight dtype
# (bf16) in-kernel so the MXU runs the native bf16 path with f32 accumulation.
# ----------------------------------------------------------------------------
def _matmul_bias_kernel(x_ref, w_ref, b_ref, o_ref, acc_ref):
    k = pl.program_id(2)

    @pl.when(k == 0)
    def _():
        acc_ref[...] = jnp.zeros_like(acc_ref)

    acc_ref[...] += jnp.dot(x_ref[...].astype(w_ref.dtype), w_ref[...],
                            preferred_element_type=jnp.float32)

    @pl.when(k == pl.num_programs(2) - 1)
    def _():
        o_ref[...] = (acc_ref[...] + b_ref[...]).astype(o_ref.dtype)


def matmul_bias(x, w, b, *, out_dtype=jnp.bfloat16,
                tm_pref=256, tn_pref=256, tk_pref=1024):
    """y = x @ w + b with x:(M,K) f32/bf16, w:(K,N) bf16, b:(1,N) f32."""
    m, kdim = x.shape
    _, n = w.shape
    tm = _pick_tile(m, tm_pref, 8)       # cap/align M: bounded LHS + acc blocks
    tn = _pick_tile(n, tn_pref, 128)
    tk = _pick_tile(kdim, tk_pref, 128)
    grid = (m // tm, n // tn, kdim // tk)
    return pl.pallas_call(
        _matmul_bias_kernel,
        out_shape=jax.ShapeDtypeStruct((m, n), out_dtype),
        grid=grid,
        in_specs=[
            pl.BlockSpec((tm, tk), lambda i, j, k: (i, k)),
            pl.BlockSpec((tk, tn), lambda i, j, k: (k, j)),
            pl.BlockSpec((1, tn), lambda i, j, k: (0, j)),
        ],
        out_specs=pl.BlockSpec((tm, tn), lambda i, j, k: (i, j)),
        scratch_shapes=[pltpu.VMEM((tm, tn), jnp.float32)],
        compiler_params=pltpu.CompilerParams(
            dimension_semantics=("parallel", "parallel", "arbitrary"),
            vmem_limit_bytes=_VMEM_LIMIT_BYTES),
    )(x, w, b)


# ----------------------------------------------------------------------------
# Kernel 2: fused MLP = Linear -> BatchNorm1d(training) -> ReLU -> Linear.
#
# Folded variant (default, best on single-TC v5e/v6e): one call over the full
# (2B, Din) stacked batch; both matmuls run at M=2B (fuller MXU rows), while BN
# mean/var are computed per view by statically slicing the (2B, H) activation.
#
# View-grid variant (fold_views=False, for v7x's 2 TensorCores): grid=(2,)
# marked "parallel", one view per core, weights Buffered(1) (constant
# index_map -> single resident VMEM buffer, no re-DMA across grid steps).
# ----------------------------------------------------------------------------
def _fused_mlp_fold_kernel(x_ref, w1_ref, b1_ref, g_ref, beta_ref,
                           w2_ref, b2_ref, o_ref, *, nviews):
    m = x_ref.shape[0]
    bsz = m // nviews
    z = jnp.dot(x_ref[...].astype(w1_ref.dtype), w1_ref[...],
                preferred_element_type=jnp.float32) + b1_ref[...]   # (2B, H) f32
    g = g_ref[...]
    beta = beta_ref[...]
    acts = []
    for v in range(nviews):                      # static unroll over 2 views
        zv = z[v * bsz:(v + 1) * bsz, :]
        mean = jnp.mean(zv, axis=0, keepdims=True)                  # (1, H)
        var = jnp.mean(jnp.square(zv - mean), axis=0, keepdims=True)  # biased
        zh = (zv - mean) * lax.rsqrt(var + 1e-5)                    # EUP rsqrt
        acts.append(jnp.maximum(zh * g + beta, 0.0))                # ReLU
    a = jnp.concatenate(acts, axis=0).astype(w2_ref.dtype)          # (2B, H) bf16
    o_ref[...] = (jnp.dot(a, w2_ref[...], preferred_element_type=jnp.float32)
                  + b2_ref[...]).astype(o_ref.dtype)


def _fused_mlp_view_kernel(x_ref, w1_ref, b1_ref, g_ref, beta_ref,
                           w2_ref, b2_ref, o_ref):
    z = jnp.dot(x_ref[...].astype(w1_ref.dtype), w1_ref[...],
                preferred_element_type=jnp.float32) + b1_ref[...]
    mean = jnp.mean(z, axis=0, keepdims=True)
    var = jnp.mean(jnp.square(z - mean), axis=0, keepdims=True)
    a = jnp.maximum((z - mean) * lax.rsqrt(var + 1e-5) * g_ref[...]
                    + beta_ref[...], 0.0)
    o_ref[...] = (jnp.dot(a.astype(w2_ref.dtype), w2_ref[...],
                          preferred_element_type=jnp.float32)
                  + b2_ref[...]).astype(o_ref.dtype)


def fused_mlp(x, p, *, nviews=2, out_dtype=jnp.bfloat16, fold_views=True):
    """x: (nviews*B, Din) -> (nviews*B, Dout); BN stats computed per view."""
    m, din = x.shape
    hidden = p["w1"].shape[1]
    dout = p["w2"].shape[1]
    # NOTE: at production scale tile only the hidden/output FEATURE axes if
    # VMEM gets tight -- never the batch axis (per-view BN stats must see the
    # full view batch).
    if fold_views:
        return pl.pallas_call(
            functools.partial(_fused_mlp_fold_kernel, nviews=nviews),
            out_shape=jax.ShapeDtypeStruct((m, dout), out_dtype),
            in_specs=[pl.BlockSpec(memory_space=pltpu.MemorySpace.VMEM)] * 7,
            out_specs=pl.BlockSpec(memory_space=pltpu.MemorySpace.VMEM),
            compiler_params=pltpu.CompilerParams(
                vmem_limit_bytes=_VMEM_LIMIT_BYTES),
        )(x, p["w1"], p["b1"], p["gamma"], p["beta"], p["w2"], p["b2"])

    # v7x path: one view per TensorCore; weights stay VMEM-resident with a
    # single buffer (constant index_map across the 2-step grid).
    bsz = m // nviews
    xv = x.reshape(nviews, bsz, din)

    def _wspec(shape):
        return pl.BlockSpec(shape, lambda v: (0,) * len(shape),
                            pipeline_mode=pl.Buffered(1))

    out = pl.pallas_call(
        _fused_mlp_view_kernel,
        out_shape=jax.ShapeDtypeStruct((nviews, bsz, dout), out_dtype),
        grid=(nviews,),
        in_specs=[
            pl.BlockSpec((None, bsz, din), lambda v: (v, 0, 0)),
            _wspec((din, hidden)), _wspec((1, hidden)), _wspec((1, hidden)),
            _wspec((1, hidden)), _wspec((hidden, dout)), _wspec((1, dout)),
        ],
        out_specs=pl.BlockSpec((None, bsz, dout), lambda v: (v, 0, 0)),
        compiler_params=pltpu.CompilerParams(
            dimension_semantics=("parallel",),
            vmem_limit_bytes=_VMEM_LIMIT_BYTES),
    )(xv, p["w1"], p["b1"], p["gamma"], p["beta"], p["w2"], p["b2"])
    return out.reshape(m, dout)


# ----------------------------------------------------------------------------
# Kernel 3: BYOL loss.  normalize (eps=1e-12 norm clamp via rsqrt on the
# squared norm) + dot + (2 - 2cos) + batch mean, reduced into an SMEM scalar.
# ----------------------------------------------------------------------------
def _byol_loss_kernel(pred_ref, tgt_ref, o_ref):
    m = pred_ref.shape[0]
    b = m // 2

    def _normalize(v):
        v = v.astype(jnp.float32)
        sumsq = jnp.sum(v * v, axis=-1, keepdims=True)              # (B, 1)
        # F.normalize clamps the L2 norm at 1e-12 -> clamp sumsq at 1e-24 and
        # use the EUP rsqrt instead of sqrt + full-precision divide.
        return v * lax.rsqrt(jnp.maximum(sumsq, 1e-24))

    p1 = _normalize(pred_ref[0:b, :])
    p2 = _normalize(pred_ref[b:m, :])
    t1 = _normalize(tgt_ref[0:b, :])
    t2 = _normalize(tgt_ref[b:m, :])
    s1 = jnp.sum(p1 * t2, axis=-1, keepdims=True)                   # (B, 1)
    s2 = jnp.sum(p2 * t1, axis=-1, keepdims=True)                   # (B, 1)
    per_sample = (2.0 - 2.0 * s1) + (2.0 - 2.0 * s2)                # (B, 1)
    o_ref[0, 0] = jnp.mean(per_sample)


def byol_loss(pred, tgt):
    return pl.pallas_call(
        _byol_loss_kernel,
        out_shape=jax.ShapeDtypeStruct((1, 1), jnp.float32),
        in_specs=[
            pl.BlockSpec(memory_space=pltpu.MemorySpace.VMEM),
            pl.BlockSpec(memory_space=pltpu.MemorySpace.VMEM),
        ],
        out_specs=pl.BlockSpec(memory_space=pltpu.MemorySpace.SMEM),
    )(pred, tgt)


# ----------------------------------------------------------------------------
# Forward pass (== BYOL.forward(image_one, image_two) -> scalar loss).
# ----------------------------------------------------------------------------
def byol_forward(image_one, image_two, params, target_params=None, *,
                 fold_views=True):
    b = image_one.shape[0]
    x1 = image_one.reshape(b, -1)
    x2 = image_two.reshape(b, -1)
    x = jnp.concatenate([x1, x2], axis=0)                        # (2B, Din)

    # Online encoder (hidden_layer=-1 -> representation = net(x)); both views
    # stacked along M so weights stream through one pallas_call.
    rep = matmul_bias(x, params["enc_w"], params["enc_b"])       # (2B, Drep) bf16

    # Online projector: per-view BN stats inside one fused call.
    online_proj = fused_mlp(rep, params["proj"], fold_views=fold_views)

    if target_params is None:
        # First-forward path: the target encoder is a deepcopy of the online
        # encoder, so its projections are bit-identical -- reuse them instead
        # of re-running encoder + projector (valid only until EMA updates).
        target_proj = online_proj
    else:
        t_rep = matmul_bias(x, target_params["enc_w"], target_params["enc_b"])
        target_proj = fused_mlp(t_rep, target_params["proj"],
                                fold_views=fold_views)
    # torch.no_grad() + .detach_() on the target branch.
    target_proj = lax.stop_gradient(target_proj)

    # Online predictor.
    online_pred = fused_mlp(online_proj, params["pred"], fold_views=fold_views)

    # loss_one = loss_fn(pred_1, tgt_2); loss_two = loss_fn(pred_2, tgt_1);
    # return (loss_one + loss_two).mean()
    loss = byol_loss(online_pred, target_proj)                   # (1, 1) SMEM
    return loss[0, 0]


# ----------------------------------------------------------------------------
# Example / smoke test.
# ----------------------------------------------------------------------------
def _linear_params(key, din, dout):
    kw, kb = jax.random.split(key)
    bound = 1.0 / jnp.sqrt(jnp.float32(din))
    # Weights pre-cast to bf16 (MXU operand / halves weight HBM traffic);
    # biases stay f32 (added to the f32 accumulator).
    w = jax.random.uniform(kw, (din, dout), jnp.float32, -bound, bound)
    b = jax.random.uniform(kb, (1, dout), jnp.float32, -bound, bound)
    return w.astype(jnp.bfloat16), b


if __name__ == "__main__":
    key = jax.random.PRNGKey(0)
    B, C, H, W = 2, 4, 16, 16            # matches BYOL's init forward (batch 2)
    D_IN = C * H * W                     # 1024 flattened features
    D_REPR = 512                         # synthetic encoder output dim
    MLP_HIDDEN = 256                     # projection_hidden_size (small test)
    PROJ = 128                           # projection_size (small test)

    ks = jax.random.split(key, 7)
    image_one = jax.random.normal(ks[0], (B, C, H, W), jnp.float32)
    image_two = jax.random.normal(ks[1], (B, C, H, W), jnp.float32)

    enc_w, enc_b = _linear_params(ks[2], D_IN, D_REPR)
    p1_w, p1_b = _linear_params(ks[3], D_REPR, MLP_HIDDEN)
    p2_w, p2_b = _linear_params(ks[4], MLP_HIDDEN, PROJ)
    q1_w, q1_b = _linear_params(ks[5], PROJ, MLP_HIDDEN)
    q2_w, q2_b = _linear_params(ks[6], MLP_HIDDEN, PROJ)

    params = {
        "enc_w": enc_w, "enc_b": enc_b,
        "proj": dict(w1=p1_w, b1=p1_b,
                     gamma=jnp.ones((1, MLP_HIDDEN), jnp.float32),
                     beta=jnp.zeros((1, MLP_HIDDEN), jnp.float32),
                     w2=p2_w, b2=p2_b),
        "pred": dict(w1=q1_w, b1=q1_b,
                     gamma=jnp.ones((1, MLP_HIDDEN), jnp.float32),
                     beta=jnp.zeros((1, MLP_HIDDEN), jnp.float32),
                     w2=q2_w, b2=q2_b),
    }

    loss = jax.jit(byol_forward)(image_one, image_two, params)
    loss = jax.block_until_ready(loss)
    assert loss.shape == () and bool(jnp.isfinite(loss)), loss
    print("KERNEL_OK")
</pallas_src>

<mosaic_0001>
module attributes {stable_mosaic.version = 11 : i64} {
  func.func @_matmul_bias_kernel(%arg0: i32, %arg1: i32, %arg2: i32, %arg3: memref<4x1024xf32, #tpu.memory_space<vmem>>, %arg4: memref<1024x256xbf16, #tpu.memory_space<vmem>>, %arg5: memref<1x256xf32, #tpu.memory_space<vmem>>, %arg6: memref<4x256xbf16, #tpu.memory_space<vmem>>, %arg7: memref<4x256xf32, #tpu.memory_space<vmem>>) attributes {dimension_semantics = [#tpu.dimension_semantics<parallel>, #tpu.dimension_semantics<parallel>, #tpu.dimension_semantics<arbitrary>], iteration_bounds = array<i64: 1, 2, 1>, scalar_prefetch = 0 : i64, scratch_operands = 1 : i64, tpu.core_type = #tpu.core_type<tc>, window_params = [{transform_indices = @transform_0, window_bounds = array<i64: 4, 1024>}, {transform_indices = @transform_1, window_bounds = array<i64: 1024, 256>}, {transform_indices = @transform_2, window_bounds = array<i64: 1, 256>}, {transform_indices = @transform_3, window_bounds = array<i64: 4, 256>}]} {
    %c0_i32 = arith.constant 0 : i32
    %0 = arith.cmpi eq, %arg2, %c0_i32 : i32
    %1 = arith.extui %0 : i1 to i32
    %c0_i32_0 = arith.constant 0 : i32
    %2 = arith.cmpi ne, %1, %c0_i32_0 : i32
    scf.if %2 {
      %cst_10 = arith.constant 0.000000e+00 : f32
      %13 = vector.broadcast %cst_10 : f32 to vector<4x256xf32>
      %c0_11 = arith.constant 0 : index
      %c0_12 = arith.constant 0 : index
      %14 = vector.load %arg7[%c0_11, %c0_12] : memref<4x256xf32, #tpu.memory_space<vmem>>, vector<4x256xf32>
      tpu.vector_store %arg7[%c0_11, %c0_12], %13 {strides = array<i32>} : memref<4x256xf32, #tpu.memory_space<vmem>>, vector<4x256xf32>,
    } else {
    }
    %c0 = arith.constant 0 : index
    %c0_1 = arith.constant 0 : index
    %3 = vector.load %arg7[%c0, %c0_1] : memref<4x256xf32, #tpu.memory_space<vmem>>, vector<4x256xf32>
    %c0_2 = arith.constant 0 : index
    %c0_3 = arith.constant 0 : index
    %4 = vector.load %arg3[%c0_2, %c0_3] : memref<4x1024xf32, #tpu.memory_space<vmem>>, vector<4x1024xf32>
    %5 = arith.truncf %4 : vector<4x1024xf32> to vector<4x1024xbf16>
    %c0_4 = arith.constant 0 : index
    %c0_5 = arith.constant 0 : index
    %6 = vector.load %arg4[%c0_4, %c0_5] : memref<1024x256xbf16, #tpu.memory_space<vmem>>, vector<1024x256xbf16>
    %cst = arith.constant dense<0.000000e+00> : vector<4x256xf32>
    %7 = tpu.matmul %5, %6, %cst {dimension_numbers = #tpu.dot_dimension_numbers<[1], [0], [0], [1], [0, 0, 1, 1], [], []>} : vector<4x1024xbf16>, vector<1024x256xbf16>, vector<4x256xf32> -> vector<4x256xf32>
    %8 = arith.addf %3, %7 : vector<4x256xf32>
    %c0_6 = arith.constant 0 : index
    %c0_7 = arith.constant 0 : index
    %9 = vector.load %arg7[%c0_6, %c0_7] : memref<4x256xf32, #tpu.memory_space<vmem>>, vector<4x256xf32>
    tpu.vector_store %arg7[%c0_6, %c0_7], %8 {strides = array<i32>} : memref<4x256xf32, #tpu.memory_space<vmem>>, vector<4x256xf32>,
    %c0_i32_8 = arith.constant 0 : i32
    %10 = arith.cmpi eq, %arg2, %c0_i32_8 : i32
    %11 = arith.extui %10 : i1 to i32
    %c0_i32_9 = arith.constant 0 : i32
    %12 = arith.cmpi ne, %11, %c0_i32_9 : i32
    scf.if %12 {
      %c0_10 = arith.constant 0 : index
      %c0_11 = arith.constant 0 : index
      %13 = vector.load %arg7[%c0_10, %c0_11] : memref<4x256xf32, #tpu.memory_space<vmem>>, vector<4x256xf32>
      %c0_12 = arith.constant 0 : index
      %c0_13 = arith.constant 0 : index
      %14 = vector.load %arg5[%c0_12, %c0_13] : memref<1x256xf32, #tpu.memory_space<vmem>>, vector<1x256xf32>
      %15 = vector.broadcast %14 : vector<1x256xf32> to vector<4x256xf32>
      %16 = arith.addf %13, %15 : vector<4x256xf32>
      %17 = arith.truncf %16 : vector<4x256xf32> to vector<4x256xbf16>
      %c0_14 = arith.constant 0 : index
      %c0_15 = arith.constant 0 : index
      %18 = vector.load %arg6[%c0_14, %c0_15] : memref<4x256xbf16, #tpu.memory_space<vmem>>, vector<4x256xbf16>
      tpu.vector_store %arg6[%c0_14, %c0_15], %17 {strides = array<i32>} : memref<4x256xbf16, #tpu.memory_space<vmem>>, vector<4x256xbf16>,
    } else {
    }
    return
  }
  func.func @transform_0(%arg0: i32, %arg1: i32, %arg2: i32) -> (i32, i32) {
    %c0_i32 = arith.constant 0 : i32
    return %arg0, %arg2 : i32, i32
  }
  func.func @transform_1(%arg0: i32, %arg1: i32, %arg2: i32) -> (i32, i32) {
    %c0_i32 = arith.constant 0 : i32
    return %arg2, %arg1 : i32, i32
  }
  func.func @transform_2(%arg0: i32, %arg1: i32, %arg2: i32) -> (i32, i32) {
    %c0_i32 = arith.constant 0 : i32
    %c0_i32_0 = arith.constant 0 : i32
    return %c0_i32, %arg1 : i32, i32
  }
  func.func @transform_3(%arg0: i32, %arg1: i32, %arg2: i32) -> (i32, i32) {
    %c0_i32 = arith.constant 0 : i32
    return %arg0, %arg1 : i32, i32
  }
}

module attributes {stable_mosaic.version = 11 : i64} {
  func.func @_fused_mlp_fold_kernel(%arg0: memref<4x128xbf16, #tpu.memory_space<vmem>>, %arg1: memref<128x256xbf16, #tpu.memory_space<vmem>>, %arg2: memref<1x256xf32, #tpu.memory_space<vmem>>, %arg3: memref<1x256xf32, #tpu.memory_space<vmem>>, %arg4: memref<1x256xf32, #tpu.memory_space<vmem>>, %arg5: memref<256x128xbf16, #tpu.memory_space<vmem>>, %arg6: memref<1x128xf32, #tpu.memory_space<vmem>>, %arg7: memref<4x128xbf16, #tpu.memory_space<vmem>>) attributes {dimension_semantics = [], scalar_prefetch = 0 : i64, scratch_operands = 0 : i64, tpu.core_type = #tpu.core_type<tc>} {
    %c0 = arith.constant 0 : index
    %c0_0 = arith.constant 0 : index
    %0 = vector.load %arg0[%c0, %c0_0] : memref<4x128xbf16, #tpu.memory_space<vmem>>, vector<4x128xbf16>
    %c0_1 = arith.constant 0 : index
    %c0_2 = arith.constant 0 : index
    %1 = vector.load %arg1[%c0_1, %c0_2] : memref<128x256xbf16, #tpu.memory_space<vmem>>, vector<128x256xbf16>
    %cst = arith.constant dense<0.000000e+00> : vector<4x256xf32>
    %2 = tpu.matmul %0, %1, %cst {dimension_numbers = #tpu.dot_dimension_numbers<[1], [0], [0], [1], [0, 0, 1, 1], [], []>} : vector<4x128xbf16>, vector<128x256xbf16>, vector<4x256xf32> -> vector<4x256xf32>
    %c0_3 = arith.constant 0 : index
    %c0_4 = arith.constant 0 : index
    %3 = vector.load %arg2[%c0_3, %c0_4] : memref<1x256xf32, #tpu.memory_space<vmem>>, vector<1x256xf32>
    %4 = vector.broadcast %3 : vector<1x256xf32> to vector<4x256xf32>
    %5 = arith.addf %2, %4 : vector<4x256xf32>
    %c0_5 = arith.constant 0 : index
    %c0_6 = arith.constant 0 : index
    %6 = vector.load %arg3[%c0_5, %c0_6] : memref<1x256xf32, #tpu.memory_space<vmem>>, vector<1x256xf32>
    %c0_7 = arith.constant 0 : index
    %c0_8 = arith.constant 0 : index
    %7 = vector.load %arg4[%c0_7, %c0_8] : memref<1x256xf32, #tpu.memory_space<vmem>>, vector<1x256xf32>
    %8 = vector.extract_strided_slice %5 {offsets = [0, 0], sizes = [2, 256], strides = [1, 1]} : vector<4x256xf32> to vector<2x256xf32>
    %cst_9 = arith.constant dense<0.000000e+00> : vector<256xf32>
    %9 = vector.multi_reduction <add>, %8, %cst_9 [0] : vector<2x256xf32> to vector<256xf32>
    %10 = vector.shape_cast %9 : vector<256xf32> to vector<1x256xf32>
    %cst_10 = arith.constant 2.000000e+00 : f32
    %11 = vector.broadcast %cst_10 : f32 to vector<1x256xf32>
    %12 = arith.divf %10, %11 : vector<1x256xf32>
    %13 = vector.broadcast %12 : vector<1x256xf32> to vector<2x256xf32>
    %14 = arith.subf %8, %13 : vector<2x256xf32>
    %15 = arith.mulf %14, %14 : vector<2x256xf32>
    %cst_11 = arith.constant dense<0.000000e+00> : vector<256xf32>
    %16 = vector.multi_reduction <add>, %15, %cst_11 [0] : vector<2x256xf32> to vector<256xf32>
    %17 = vector.shape_cast %16 : vector<256xf32> to vector<1x256xf32>
    %cst_12 = arith.constant 2.000000e+00 : f32
    %18 = vector.broadcast %cst_12 : f32 to vector<1x256xf32>
    %19 = arith.divf %17, %18 : vector<1x256xf32>
    %20 = vector.broadcast %12 : vector<1x256xf32> to vector<2x256xf32>
    %21 = arith.subf %8, %20 : vector<2x256xf32>
    %cst_13 = arith.constant 9.99999974E-6 : f32
    %22 = vector.broadcast %cst_13 : f32 to vector<1x256xf32>
    %23 = arith.addf %19, %22 : vector<1x256xf32>
    %24 = math.rsqrt %23 : vector<1x256xf32>
    %25 = vector.broadcast %24 : vector<1x256xf32> to vector<2x256xf32>
    %26 = arith.mulf %21, %25 : vector<2x256xf32>
    %27 = vector.broadcast %6 : vector<1x256xf32> to vector<2x256xf32>
    %28 = arith.mulf %26, %27 : vector<2x256xf32>
    %29 = vector.broadcast %7 : vector<1x256xf32> to vector<2x256xf32>
    %30 = arith.addf %28, %29 : vector<2x256xf32>
    %cst_14 = arith.constant 0.000000e+00 : f32
    %31 = vector.broadcast %cst_14 : f32 to vector<2x256xf32>
    %32 = arith.maximumf %30, %31 : vector<2x256xf32>
    %33 = vector.extract_strided_slice %5 {offsets = [2, 0], sizes = [2, 256], strides = [1, 1]} : vector<4x256xf32> to vector<2x256xf32>
    %cst_15 = arith.constant dense<0.000000e+00> : vector<256xf32>
    %34 = vector.multi_reduction <add>, %33, %cst_15 [0] : vector<2x256xf32> to vector<256xf32>
    %35 = vector.shape_cast %34 : vector<256xf32> to vector<1x256xf32>
    %cst_16 = arith.constant 2.000000e+00 : f32
    %36 = vector.broadcast %cst_16 : f32 to vector<1x256xf32>
    %37 = arith.divf %35, %36 : vector<1x256xf32>
    %38 = vector.broadcast %37 : vector<1x256xf32> to vector<2x256xf32>
    %39 = arith.subf %33, %38 : vector<2x256xf32>
    %40 = arith.mulf %39, %39 : vector<2x256xf32>
    %cst_17 = arith.constant dense<0.000000e+00> : vector<256xf32>
    %41 = vector.multi_reduction <add>, %40, %cst_17 [0] : vector<2x256xf32> to vector<256xf32>
    %42 = vector.shape_cast %41 : vector<256xf32> to vector<1x256xf32>
    %cst_18 = arith.constant 2.000000e+00 : f32
    %43 = vector.broadcast %cst_18 : f32 to vector<1x256xf32>
    %44 = arith.divf %42, %43 : vector<1x256xf32>
    %45 = vector.broadcast %37 : vector<1x256xf32> to vector<2x256xf32>
    %46 = arith.subf %33, %45 : vector<2x256xf32>
    %cst_19 = arith.constant 9.99999974E-6 : f32
    %47 = vector.broadcast %cst_19 : f32 to vector<1x256xf32>
    %48 = arith.addf %44, %47 : vector<1x256xf32>
    %49 = math.rsqrt %48 : vector<1x256xf32>
    %50 = vector.broadcast %49 : vector<1x256xf32> to vector<2x256xf32>
    %51 = arith.mulf %46, %50 : vector<2x256xf32>
    %52 = vector.broadcast %6 : vector<1x256xf32> to vector<2x256xf32>
    %53 = arith.mulf %51, %52 : vector<2x256xf32>
    %54 = vector.broadcast %7 : vector<1x256xf32> to vector<2x256xf32>
    %55 = arith.addf %53, %54 : vector<2x256xf32>
    %cst_20 = arith.constant 0.000000e+00 : f32
    %56 = vector.broadcast %cst_20 : f32 to vector<2x256xf32>
    %57 = arith.maximumf %55, %56 : vector<2x256xf32>
    %58 = tpu.concatenate %32, %57 in 0 : vector<2x256xf32>, vector<2x256xf32> -> vector<4x256xf32>
    %59 = arith.truncf %58 : vector<4x256xf32> to vector<4x256xbf16>
    %c0_21 = arith.constant 0 : index
    %c0_22 = arith.constant 0 : index
    %60 = vector.load %arg5[%c0_21, %c0_22] : memref<256x128xbf16, #tpu.memory_space<vmem>>, vector<256x128xbf16>
    %cst_23 = arith.constant dense<0.000000e+00> : vector<4x128xf32>
    %61 = tpu.matmul %59, %60, %cst_23 {dimension_numbers = #tpu.dot_dimension_numbers<[1], [0], [0], [1], [0, 0, 1, 1], [], []>} : vector<4x256xbf16>, vector<256x128xbf16>, vector<4x128xf32> -> vector<4x128xf32>
    %c0_24 = arith.constant 0 : index
    %c0_25 = arith.constant 0 : index
    %62 = vector.load %arg6[%c0_24, %c0_25] : memref<1x128xf32, #tpu.memory_space<vmem>>, vector<1x128xf32>
    %63 = vector.broadcast %62 : vector<1x128xf32> to vector<4x128xf32>
    %64 = arith.addf %61, %63 : vector<4x128xf32>
    %65 = arith.truncf %64 : vector<4x128xf32> to vector<4x128xbf16>
    %c0_26 = arith.constant 0 : index
    %c0_27 = arith.constant 0 : index
    %66 = vector.load %arg7[%c0_26, %c0_27] : memref<4x128xbf16, #tpu.memory_space<vmem>>, vector<4x128xbf16>
    tpu.vector_store %arg7[%c0_26, %c0_27], %65 {strides = array<i32>} : memref<4x128xbf16, #tpu.memory_space<vmem>>, vector<4x128xbf16>,
    return
  }
}

module attributes {stable_mosaic.version = 11 : i64} {
  func.func @_byol_loss_kernel(%arg0: memref<4x128xbf16, #tpu.memory_space<vmem>>, %arg1: memref<4x128xbf16, #tpu.memory_space<vmem>>, %arg2: memref<1x1xf32, #tpu.memory_space<smem>>) attributes {dimension_semantics = [], scalar_prefetch = 0 : i64, scratch_operands = 0 : i64, tpu.core_type = #tpu.core_type<tc>} {
    %c0 = arith.constant 0 : index
    %c0_0 = arith.constant 0 : index
    %0 = vector.load %arg0[%c0, %c0_0] : memref<4x128xbf16, #tpu.memory_space<vmem>>, vector<2x128xbf16>
    %1 = arith.extf %0 : vector<2x128xbf16> to vector<2x128xf32>
    %2 = arith.mulf %1, %1 : vector<2x128xf32>
    %cst = arith.constant dense<0.000000e+00> : vector<2xf32>
    %3 = vector.multi_reduction <add>, %2, %cst [1] : vector<2x128xf32> to vector<2xf32>
    %4 = vector.shape_cast %3 : vector<2xf32> to vector<2x1xf32>
    %cst_1 = arith.constant 1.000000e-24 : f32
    %5 = vector.broadcast %cst_1 : f32 to vector<2x1xf32>
    %6 = arith.maximumf %4, %5 : vector<2x1xf32>
    %7 = math.rsqrt %6 : vector<2x1xf32>
    %8 = vector.broadcast %7 : vector<2x1xf32> to vector<2x128xf32>
    %9 = arith.mulf %1, %8 : vector<2x128xf32>
    %c2 = arith.constant 2 : index
    %c0_2 = arith.constant 0 : index
    %10 = vector.load %arg0[%c2, %c0_2] : memref<4x128xbf16, #tpu.memory_space<vmem>>, vector<2x128xbf16>
    %11 = arith.extf %10 : vector<2x128xbf16> to vector<2x128xf32>
    %12 = arith.mulf %11, %11 : vector<2x128xf32>
    %cst_3 = arith.constant dense<0.000000e+00> : vector<2xf32>
    %13 = vector.multi_reduction <add>, %12, %cst_3 [1] : vector<2x128xf32> to vector<2xf32>
    %14 = vector.shape_cast %13 : vector<2xf32> to vector<2x1xf32>
    %cst_4 = arith.constant 1.000000e-24 : f32
    %15 = vector.broadcast %cst_4 : f32 to vector<2x1xf32>
    %16 = arith.maximumf %14, %15 : vector<2x1xf32>
    %17 = math.rsqrt %16 : vector<2x1xf32>
    %18 = vector.broadcast %17 : vector<2x1xf32> to vector<2x128xf32>
    %19 = arith.mulf %11, %18 : vector<2x128xf32>
    %c0_5 = arith.constant 0 : index
    %c0_6 = arith.constant 0 : index
    %20 = vector.load %arg1[%c0_5, %c0_6] : memref<4x128xbf16, #tpu.memory_space<vmem>>, vector<2x128xbf16>
    %21 = arith.extf %20 : vector<2x128xbf16> to vector<2x128xf32>
    %22 = arith.mulf %21, %21 : vector<2x128xf32>
    %cst_7 = arith.constant dense<0.000000e+00> : vector<2xf32>
    %23 = vector.multi_reduction <add>, %22, %cst_7 [1] : vector<2x128xf32> to vector<2xf32>
    %24 = vector.shape_cast %23 : vector<2xf32> to vector<2x1xf32>
    %cst_8 = arith.constant 1.000000e-24 : f32
    %25 = vector.broadcast %cst_8 : f32 to vector<2x1xf32>
    %26 = arith.maximumf %24, %25 : vector<2x1xf32>
    %27 = math.rsqrt %26 : vector<2x1xf32>
    %28 = vector.broadcast %27 : vector<2x1xf32> to vector<2x128xf32>
    %29 = arith.mulf %21, %28 : vector<2x128xf32>
    %c2_9 = arith.constant 2 : index
    %c0_10 = arith.constant 0 : index
    %30 = vector.load %arg1[%c2_9, %c0_10] : memref<4x128xbf16, #tpu.memory_space<vmem>>, vector<2x128xbf16>
    %31 = arith.extf %30 : vector<2x128xbf16> to vector<2x128xf32>
    %32 = arith.mulf %31, %31 : vector<2x128xf32>
    %cst_11 = arith.constant dense<0.000000e+00> : vector<2xf32>
    %33 = vector.multi_reduction <add>, %32, %cst_11 [1] : vector<2x128xf32> to vector<2xf32>
    %34 = vector.shape_cast %33 : vector<2xf32> to vector<2x1xf32>
    %cst_12 = arith.constant 1.000000e-24 : f32
    %35 = vector.broadcast %cst_12 : f32 to vector<2x1xf32>
    %36 = arith.maximumf %34, %35 : vector<2x1xf32>
    %37 = math.rsqrt %36 : vector<2x1xf32>
    %38 = vector.broadcast %37 : vector<2x1xf32> to vector<2x128xf32>
    %39 = arith.mulf %31, %38 : vector<2x128xf32>
    %40 = arith.mulf %9, %39 : vector<2x128xf32>
    %cst_13 = arith.constant dense<0.000000e+00> : vector<2xf32>
    %41 = vector.multi_reduction <add>, %40, %cst_13 [1] : vector<2x128xf32> to vector<2xf32>
    %42 = vector.shape_cast %41 : vector<2xf32> to vector<2x1xf32>
    %43 = arith.mulf %19, %29 : vector<2x128xf32>
    %cst_14 = arith.constant dense<0.000000e+00> : vector<2xf32>
    %44 = vector.multi_reduction <add>, %43, %cst_14 [1] : vector<2x128xf32> to vector<2xf32>
    %45 = vector.shape_cast %44 : vector<2xf32> to vector<2x1xf32>
    %cst_15 = arith.constant 2.000000e+00 : f32
    %46 = vector.broadcast %cst_15 : f32 to vector<2x1xf32>
    %47 = arith.mulf %46, %42 : vector<2x1xf32>
    %cst_16 = arith.constant 2.000000e+00 : f32
    %48 = vector.broadcast %cst_16 : f32 to vector<2x1xf32>
    %49 = arith.subf %48, %47 : vector<2x1xf32>
    %cst_17 = arith.constant 2.000000e+00 : f32
    %50 = vector.broadcast %cst_17 : f32 to vector<2x1xf32>
    %51 = arith.mulf %50, %45 : vector<2x1xf32>
    %cst_18 = arith.constant 2.000000e+00 : f32
    %52 = vector.broadcast %cst_18 : f32 to vector<2x1xf32>
    %53 = arith.subf %52, %51 : vector<2x1xf32>
    %54 = arith.addf %49, %53 : vector<2x1xf32>
    %55 = vector.shape_cast %54 : vector<2x1xf32> to vector<1x2x1xf32>
    %cst_19 = arith.constant dense<0.000000e+00> : vector<1xf32>
    %56 = vector.multi_reduction <add>, %55, %cst_19 [1, 2] : vector<1x2x1xf32> to vector<1xf32>
    %57 = vector.shape_cast %56 : vector<1xf32> to vector<1x1x1xf32>
    %58 = vector.extract %57[0, 0, 0] : f32 from vector<1x1x1xf32>
    %cst_20 = arith.constant 2.000000e+00 : f32
    %59 = arith.divf %58, %cst_20 : f32
    %c0_21 = arith.constant 0 : index
    %c0_22 = arith.constant 0 : index
    %60 = memref.load %arg2[%c0_21, %c0_22] : memref<1x1xf32, #tpu.memory_space<smem>>
    memref.store %59, %arg2[%c0_21, %c0_22] : memref<1x1xf32, #tpu.memory_space<smem>>
    return
  }
}

module attributes {stable_mosaic.version = 11 : i64} {
  func.func @_fused_mlp_fold_kernel(%arg0: memref<4x512xbf16, #tpu.memory_space<vmem>>, %arg1: memref<512x256xbf16, #tpu.memory_space<vmem>>, %arg2: memref<1x256xf32, #tpu.memory_space<vmem>>, %arg3: memref<1x256xf32, #tpu.memory_space<vmem>>, %arg4: memref<1x256xf32, #tpu.memory_space<vmem>>, %arg5: memref<256x128xbf16, #tpu.memory_space<vmem>>, %arg6: memref<1x128xf32, #tpu.memory_space<vmem>>, %arg7: memref<4x128xbf16, #tpu.memory_space<vmem>>) attributes {dimension_semantics = [], scalar_prefetch = 0 : i64, scratch_operands = 0 : i64, tpu.core_type = #tpu.core_type<tc>} {
    %c0 = arith.constant 0 : index
    %c0_0 = arith.constant 0 : index
    %0 = vector.load %arg0[%c0, %c0_0] : memref<4x512xbf16, #tpu.memory_space<vmem>>, vector<4x512xbf16>
    %c0_1 = arith.constant 0 : index
    %c0_2 = arith.constant 0 : index
    %1 = vector.load %arg1[%c0_1, %c0_2] : memref<512x256xbf16, #tpu.memory_space<vmem>>, vector<512x256xbf16>
    %cst = arith.constant dense<0.000000e+00> : vector<4x256xf32>
    %2 = tpu.matmul %0, %1, %cst {dimension_numbers = #tpu.dot_dimension_numbers<[1], [0], [0], [1], [0, 0, 1, 1], [], []>} : vector<4x512xbf16>, vector<512x256xbf16>, vector<4x256xf32> -> vector<4x256xf32>
    %c0_3 = arith.constant 0 : index
    %c0_4 = arith.constant 0 : index
    %3 = vector.load %arg2[%c0_3, %c0_4] : memref<1x256xf32, #tpu.memory_space<vmem>>, vector<1x256xf32>
    %4 = vector.broadcast %3 : vector<1x256xf32> to vector<4x256xf32>
    %5 = arith.addf %2, %4 : vector<4x256xf32>
    %c0_5 = arith.constant 0 : index
    %c0_6 = arith.constant 0 : index
    %6 = vector.load %arg3[%c0_5, %c0_6] : memref<1x256xf32, #tpu.memory_space<vmem>>, vector<1x256xf32>
    %c0_7 = arith.constant 0 : index
    %c0_8 = arith.constant 0 : index
    %7 = vector.load %arg4[%c0_7, %c0_8] : memref<1x256xf32, #tpu.memory_space<vmem>>, vector<1x256xf32>
    %8 = vector.extract_strided_slice %5 {offsets = [0, 0], sizes = [2, 256], strides = [1, 1]} : vector<4x256xf32> to vector<2x256xf32>
    %cst_9 = arith.constant dense<0.000000e+00> : vector<256xf32>
    %9 = vector.multi_reduction <add>, %8, %cst_9 [0] : vector<2x256xf32> to vector<256xf32>
    %10 = vector.shape_cast %9 : vector<256xf32> to vector<1x256xf32>
    %cst_10 = arith.constant 2.000000e+00 : f32
    %11 = vector.broadcast %cst_10 : f32 to vector<1x256xf32>
    %12 = arith.divf %10, %11 : vector<1x256xf32>
    %13 = vector.broadcast %12 : vector<1x256xf32> to vector<2x256xf32>
    %14 = arith.subf %8, %13 : vector<2x256xf32>
    %15 = arith.mulf %14, %14 : vector<2x256xf32>
    %cst_11 = arith.constant dense<0.000000e+00> : vector<256xf32>
    %16 = vector.multi_reduction <add>, %15, %cst_11 [0] : vector<2x256xf32> to vector<256xf32>
    %17 = vector.shape_cast %16 : vector<256xf32> to vector<1x256xf32>
    %cst_12 = arith.constant 2.000000e+00 : f32
    %18 = vector.broadcast %cst_12 : f32 to vector<1x256xf32>
    %19 = arith.divf %17, %18 : vector<1x256xf32>
    %20 = vector.broadcast %12 : vector<1x256xf32> to vector<2x256xf32>
    %21 = arith.subf %8, %20 : vector<2x256xf32>
    %cst_13 = arith.constant 9.99999974E-6 : f32
    %22 = vector.broadcast %cst_13 : f32 to vector<1x256xf32>
    %23 = arith.addf %19, %22 : vector<1x256xf32>
    %24 = math.rsqrt %23 : vector<1x256xf32>
    %25 = vector.broadcast %24 : vector<1x256xf32> to vector<2x256xf32>
    %26 = arith.mulf %21, %25 : vector<2x256xf32>
    %27 = vector.broadcast %6 : vector<1x256xf32> to vector<2x256xf32>
    %28 = arith.mulf %26, %27 : vector<2x256xf32>
    %29 = vector.broadcast %7 : vector<1x256xf32> to vector<2x256xf32>
    %30 = arith.addf %28, %29 : vector<2x256xf32>
    %cst_14 = arith.constant 0.000000e+00 : f32
    %31 = vector.broadcast %cst_14 : f32 to vector<2x256xf32>
    %32 = arith.maximumf %30, %31 : vector<2x256xf32>
    %33 = vector.extract_strided_slice %5 {offsets = [2, 0], sizes = [2, 256], strides = [1, 1]} : vector<4x256xf32> to vector<2x256xf32>
    %cst_15 = arith.constant dense<0.000000e+00> : vector<256xf32>
    %34 = vector.multi_reduction <add>, %33, %cst_15 [0] : vector<2x256xf32> to vector<256xf32>
    %35 = vector.shape_cast %34 : vector<256xf32> to vector<1x256xf32>
    %cst_16 = arith.constant 2.000000e+00 : f32
    %36 = vector.broadcast %cst_16 : f32 to vector<1x256xf32>
    %37 = arith.divf %35, %36 : vector<1x256xf32>
    %38 = vector.broadcast %37 : vector<1x256xf32> to vector<2x256xf32>
    %39 = arith.subf %33, %38 : vector<2x256xf32>
    %40 = arith.mulf %39, %39 : vector<2x256xf32>
    %cst_17 = arith.constant dense<0.000000e+00> : vector<256xf32>
    %41 = vector.multi_reduction <add>, %40, %cst_17 [0] : vector<2x256xf32> to vector<256xf32>
    %42 = vector.shape_cast %41 : vector<256xf32> to vector<1x256xf32>
    %cst_18 = arith.constant 2.000000e+00 : f32
    %43 = vector.broadcast %cst_18 : f32 to vector<1x256xf32>
    %44 = arith.divf %42, %43 : vector<1x256xf32>
    %45 = vector.broadcast %37 : vector<1x256xf32> to vector<2x256xf32>
    %46 = arith.subf %33, %45 : vector<2x256xf32>
    %cst_19 = arith.constant 9.99999974E-6 : f32
    %47 = vector.broadcast %cst_19 : f32 to vector<1x256xf32>
    %48 = arith.addf %44, %47 : vector<1x256xf32>
    %49 = math.rsqrt %48 : vector<1x256xf32>
    %50 = vector.broadcast %49 : vector<1x256xf32> to vector<2x256xf32>
    %51 = arith.mulf %46, %50 : vector<2x256xf32>
    %52 = vector.broadcast %6 : vector<1x256xf32> to vector<2x256xf32>
    %53 = arith.mulf %51, %52 : vector<2x256xf32>
    %54 = vector.broadcast %7 : vector<1x256xf32> to vector<2x256xf32>
    %55 = arith.addf %53, %54 : vector<2x256xf32>
    %cst_20 = arith.constant 0.000000e+00 : f32
    %56 = vector.broadcast %cst_20 : f32 to vector<2x256xf32>
    %57 = arith.maximumf %55, %56 : vector<2x256xf32>
    %58 = tpu.concatenate %32, %57 in 0 : vector<2x256xf32>, vector<2x256xf32> -> vector<4x256xf32>
    %59 = arith.truncf %58 : vector<4x256xf32> to vector<4x256xbf16>
    %c0_21 = arith.constant 0 : index
    %c0_22 = arith.constant 0 : index
    %60 = vector.load %arg5[%c0_21, %c0_22] : memref<256x128xbf16, #tpu.memory_space<vmem>>, vector<256x128xbf16>
    %cst_23 = arith.constant dense<0.000000e+00> : vector<4x128xf32>
    %61 = tpu.matmul %59, %60, %cst_23 {dimension_numbers = #tpu.dot_dimension_numbers<[1], [0], [0], [1], [0, 0, 1, 1], [], []>} : vector<4x256xbf16>, vector<256x128xbf16>, vector<4x128xf32> -> vector<4x128xf32>
    %c0_24 = arith.constant 0 : index
    %c0_25 = arith.constant 0 : index
    %62 = vector.load %arg6[%c0_24, %c0_25] : memref<1x128xf32, #tpu.memory_space<vmem>>, vector<1x128xf32>
    %63 = vector.broadcast %62 : vector<1x128xf32> to vector<4x128xf32>
    %64 = arith.addf %61, %63 : vector<4x128xf32>
    %65 = arith.truncf %64 : vector<4x128xf32> to vector<4x128xbf16>
    %c0_26 = arith.constant 0 : index
    %c0_27 = arith.constant 0 : index
    %66 = vector.load %arg7[%c0_26, %c0_27] : memref<4x128xbf16, #tpu.memory_space<vmem>>, vector<4x128xbf16>
    tpu.vector_store %arg7[%c0_26, %c0_27], %65 {strides = array<i32>} : memref<4x128xbf16, #tpu.memory_space<vmem>>, vector<4x128xbf16>,
    return
  }
}

</mosaic_0001>

<llo_original>
// kernel: byol_forward.7
$region0: #{byol_forward.7}
  #allocation0 [shape = 'u32[]', space=smem, size = 0x4, offset = 0x4, fixed_abs, tag = 'smem constant byte address 0x4 - core index']
  #allocation1 [shape = 'u32[72,128]{1,0:T(1,128)}', space=vmem, size = 0x9000, scoped, tag = 'internal scratch']
  %s0 = inlined_call_operand.vmem [shape: bf16[4,128], index: 0, kind: input, shape index: {}]
  %s1 = inlined_call_operand.vmem [shape: bf16[4,128], index: 1, kind: input, shape index: {}]
  %s2 = inlined_call_operand.hbm [shape: f32[1,1], index: 2, kind: output, shape index: {}]
  %s3 = sld [smem:[#allocation0]]
  $region18: #{byol_forward.7} parent=0
    _
  %s5 = ssub.s32 1, %s3
  %s6 = scalar_select 0, %s5, %s3
  $region1: #{byol_forward.7} parent=0
    #allocation2 [shape = 'u8[512]{0}', space=smem, size = 0x200, scoped, tag = 'output window, operand 0, single buffered']
    #allocation3 [shape = 's32[1]{0}', space=sflag, size = 0x4, scoped, tag = 'scoped memory for byol_forward.7']
    %7 = vsyncpa [#allocation3], 0
    // Predicated region
    $region2: #{byol_forward.7} parent=1 // pred_check
      _
    $region3: #{byol_forward.7} parent=1 // pred_check_branch
      %9 = sbr.rel (0) target = $region5
    $region4: #{byol_forward.7} parent=1 // pred_region
      _
    $region5: #{byol_forward.7} parent=1 // pred_fallthru
      _
    // Predicated region
    $region6: #{byol_forward.7} parent=1 // pred_check
      _
    $region7: #{byol_forward.7} parent=1 // pred_check_branch
      %11 = sbr.rel (0) target = $region9
    $region8: #{byol_forward.7} parent=1 // pred_region
      _
    $region9: #{byol_forward.7} parent=1 // pred_fallthru
      _
    %v12 = vld [vmem:[%s0] sm:$0x1]
    %v13 = vunpack.c.l.bf16 %v12
    %v14 = vmul.f32 %v13, %v13
    %vm15 = vcmask 1041408
    %v16 = vsel %vm15, %v14, 0.0
    %17 = vadd.xlane.f32.xlu0 %v16
    %v18 = vpop.xlane.xlu0 %17
    %v19 = vmax.f32 %v18, 1e-24
    %v20 = vrsqrt.pop %v19
    %v21 = vmul.f32 %v20, %v19
    %v22 = vmul.f32 %v21, %v20
    %v23 = vmul.f32 0.5, %v22
    %v24 = vsub.f32 1.5, %v23
    %v25 = vmul.f32 %v20, %v24
    %vm26 = vweird.f32 %v19
    %vm27 = vweird.f32 %v20
    %vm28 = vmor %vm26, %vm27
    %v29 = vsel %vm28, %v20, %v25
    %v30 = vmul.f32 %v13, %v29
    %v31 = vld [vmem:[%s0] sm:$0x2]
    %v32 = vunpack.c.l.bf16 %v31
    %v33 = vmul.f32 %v32, %v32
    %vm34 = vcmask 1043458
    %v35 = vsel %vm34, %v33, 0.0
    %36 = vadd.xlane.f32.xlu0 %v35
    %v37 = vpop.xlane.xlu0 %36
    %v38 = vmax.f32 %v37, 1e-24
    %v39 = vrsqrt.pop %v38
    %v40 = vmul.f32 %v39, %v38
    %v41 = vmul.f32 %v40, %v39
    %v42 = vmul.f32 0.5, %v41
    %v43 = vsub.f32 1.5, %v42
    %v44 = vmul.f32 %v39, %v43
    %vm45 = vweird.f32 %v38
    %vm46 = vweird.f32 %v39
    %vm47 = vmor %vm45, %vm46
    %v48 = vsel %vm47, %v39, %v44
    %v49 = vmul.f32 %v32, %v48
    %v50 = vld [vmem:[%s1] sm:$0x1]
    %v51 = vunpack.c.l.bf16 %v50
    %v52 = vmul.f32 %v51, %v51
    %v53 = vsel %vm15, %v52, 0.0
    %54 = vadd.xlane.f32.xlu0 %v53
    %v55 = vpop.xlane.xlu0 %54
    %v56 = vmax.f32 %v55, 1e-24
    %v57 = vrsqrt.pop %v56
    %v58 = vmul.f32 %v57, %v56
    %v59 = vmul.f32 %v58, %v57
    %v60 = vmul.f32 0.5, %v59
    %v61 = vsub.f32 1.5, %v60
    %v62 = vmul.f32 %v57, %v61
    %vm63 = vweird.f32 %v56
    %vm64 = vweird.f32 %v57
    %vm65 = vmor %vm63, %vm64
    %v66 = vsel %vm65, %v57, %v62
    %v67 = vmul.f32 %v51, %v66
    %v68 = vld [vmem:[%s1] sm:$0x2]
    %v69 = vunpack.c.l.bf16 %v68
    %v70 = vmul.f32 %v69, %v69
    %v71 = vsel %vm34, %v70, 0.0
    %72 = vadd.xlane.f32.xlu0 %v71
    %v73 = vpop.xlane.xlu0 %72
    %v74 = vmax.f32 %v73, 1e-24
    %v75 = vrsqrt.pop %v74
    %v76 = vmul.f32 %v75, %v74
    %v77 = vmul.f32 %v76, %v75
    %v78 = vmul.f32 0.5, %v77
    %v79 = vsub.f32 1.5, %v78
    %v80 = vmul.f32 %v75, %v79
    %vm81 = vweird.f32 %v74
    %vm82 = vweird.f32 %v75
    %vm83 = vmor %vm81, %vm82
    %v84 = vsel %vm83, %v75, %v80
    %v85 = vmul.f32 %v69, %v84
    %v87 = vrot.slane %v85, 6
    %v88 = vrot.slane %v87, 4
    %v90 = vmul.f32 %v30, %v88
    %v91 = vsel %vm15, %v90, 0.0
    %92 = vadd.xlane.f32.xlu0 %v91
    %v93 = vpop.xlane.xlu0 %92
    %v95 = vrot.slane %v67, 6
    %v97 = vmul.f32 %v49, %v95
    %v98 = vsel %vm34, %v97, 0.0
    %99 = vadd.xlane.f32.xlu0 %v98
    %v100 = vpop.xlane.xlu0 %99
    %v101 = vmul.f32 %v93, 2.0
    %v102 = vsub.f32 2.0, %v101
    %v103 = vmul.f32 %v100, 2.0
    %v104 = vsub.f32 2.0, %v103
    %v106 = vrot.slane %v104, 2
    %v108 = vadd.f32 %v102, %v106
    %vm109 = vcmask 1024
    %v110 = vsel %vm109, %v108, 0.0
    %111 = vadd.xlane.f32.xlu0 %v110
    %v112 = vpop.xlane.xlu0 %111
    %v113 = vrot.slane %v112, 4
    %v114 = vadd.f32 %v112, %v113
    %v115 = vrot.slane %v114, 2
    %v116 = vadd.f32 %v114, %v115
    %v117 = vrot.slane %v116, 1
    %v118 = vadd.f32 %v116, %v117
    %s119 = vtos %v118
    %v120 = vrcp.pop 2.0
    %v121 = vmul.f32 2.0, %v120
    %v122 = vsub.f32 1.0, %v121
    %v123 = vmul.f32 %v120, %v122
    %v124 = vadd.f32 %v120, %v123
    %vm125 = vweird.f32 %v120
    %v126 = vsel %vm125, %v120, %v124
    %s127 = vtos %v126
    %s128 = smul.f32 %s119, %s127
    %s129 = scalar_lea.smem [#allocation2], 0
    %130 = sst [smem:[%s129]] %s128
    // Predicated region
    $region10: #{byol_forward.7} parent=1 // pred_check
      _
    $region11: #{byol_forward.7} parent=1 // pred_check_branch
      %132 = sbr.rel (0) target = $region13
    $region12: #{byol_forward.7} parent=1 // pred_region
      %134 = vsyncadd [#allocation3], 0
      %s136 = sshll.u32 %s2, 4
      %s137 = int_to_ptr.hbm [resolvable:$true] %s136
      %139 = dma.smem_to_hbm [#allocation2], 16, %s137, [#allocation3]
    $region13: #{byol_forward.7} parent=1 // pred_fallthru
      _
    // Predicated region
    $region14: #{byol_forward.7} parent=1 // pred_check
      _
    $region15: #{byol_forward.7} parent=1 // pred_check_branch
      %141 = sbr.rel (0) target = $region17
    $region16: #{byol_forward.7} parent=1 // pred_region
      %143 = dma.done [#allocation3], 16
    $region17: #{byol_forward.7} parent=1 // pred_fallthru
      _
    %144 = sfence
    %145 = vsyncpa [#allocation3], 1

// kernel: byol_forward.6
$region0: #{byol_forward.6}
  #allocation0 [shape = 'u32[]', space=smem, size = 0x4, offset = 0x4, fixed_abs, tag = 'smem constant byte address 0x4 - core index']
  #allocation1 [shape = 'u32[72,128]{1,0:T(1,128)}', space=vmem, size = 0x9000, scoped, tag = 'internal scratch']
  %s0 = inlined_call_operand.vmem [shape: bf16[4,128], index: 0, kind: input, shape index: {}]
  %s1 = inlined_call_operand.hbm [shape: bf16[128,256], index: 1, kind: input, shape index: {}]
  %s2 = inlined_call_operand.vmem [shape: f32[1,256], index: 2, kind: input, shape index: {}]
  %s3 = inlined_call_operand.vmem [shape: f32[1,256], index: 3, kind: input, shape index: {}]
  %s4 = inlined_call_operand.vmem [shape: f32[1,256], index: 4, kind: input, shape index: {}]
  %s5 = inlined_call_operand.hbm [shape: bf16[256,128], index: 5, kind: input, shape index: {}]
  %s6 = inlined_call_operand.vmem [shape: f32[1,128], index: 6, kind: input, shape index: {}]
  %s7 = inlined_call_operand.vmem [shape: bf16[4,128], index: 7, kind: output, shape index: {}]
  %s8 = sld [smem:[#allocation0]]
  $region46: #{byol_forward.6} parent=0
    _
  %s10 = ssub.s32 1, %s8
  %s11 = scalar_select 0, %s10, %s8
  $region1: #{byol_forward.6} parent=0
    #allocation2 [shape = 'u8[65536]{0}', space=vmem, size = 0x10000, scoped, tag = 'input window, operand 1, single buffered']
    #allocation3 [shape = 's32[1]{0}', space=sflag, size = 0x4, scoped, tag = 'scoped memory for byol_forward.6']
    #allocation4 [shape = 'u8[65536]{0}', space=vmem, size = 0x10000, scoped, tag = 'input window, operand 5, single buffered']
    #allocation5 [shape = 's32[1]{0}', space=sflag, size = 0x4, scoped, tag = 'scoped memory for byol_forward.6']
    %12 = vsyncpa [#allocation3], 0
    %13 = vsyncpa [#allocation5], 0
    // Predicated region
    $region2: #{byol_forward.6} parent=1 // pred_check
      _
    $region3: #{byol_forward.6} parent=1 // pred_check_branch
      %15 = sbr.rel (0) target = $region5
    $region4: #{byol_forward.6} parent=1 // pred_region
      _
    $region5: #{byol_forward.6} parent=1 // pred_fallthru
      _
    // Predicated region
    $region6: #{byol_forward.6} parent=1 // pred_check
      _
    $region7: #{byol_forward.6} parent=1 // pred_check_branch
      %17 = sbr.rel (0) target = $region9
    $region8: #{byol_forward.6} parent=1 // pred_region
      %19 = vsyncadd [#allocation3], 0
      %s20 = sshll.u32 %s1, 4
      %s21 = int_to_ptr.hbm [resolvable:$true] %s20
      %s22 = sshll.u32 [#allocation2], 4
      %s23 = int_to_ptr.vmem [resolvable:$true] %s22
      %28 = dma.hbm_to_vmem [thread:$0]  %s21, 2048, %s23, [#allocation3], 128, 128, 8
    $region9: #{byol_forward.6} parent=1 // pred_fallthru
      _
    // Predicated region
    $region10: #{byol_forward.6} parent=1 // pred_check
      _
    $region11: #{byol_forward.6} parent=1 // pred_check_branch
      %30 = sbr.rel (0) target = $region13
    $region12: #{byol_forward.6} parent=1 // pred_region
      _
    $region13: #{byol_forward.6} parent=1 // pred_fallthru
      _
    // Predicated region
    $region14: #{byol_forward.6} parent=1 // pred_check
      _
    $region15: #{byol_forward.6} parent=1 // pred_check_branch
      %32 = sbr.rel (0) target = $region17
    $region16: #{byol_forward.6} parent=1 // pred_region
      _
    $region17: #{byol_forward.6} parent=1 // pred_fallthru
      _
    // Predicated region
    $region18: #{byol_forward.6} parent=1 // pred_check
      _
    $region19: #{byol_forward.6} parent=1 // pred_check_branch
      %34 = sbr.rel (0) target = $region21
    $region20: #{byol_forward.6} parent=1 // pred_region
      _
    $region21: #{byol_forward.6} parent=1 // pred_fallthru
      _
    // Predicated region
    $region22: #{byol_forward.6} parent=1 // pred_check
      _
    $region23: #{byol_forward.6} parent=1 // pred_check_branch
      %36 = sbr.rel (0) target = $region25
    $region24: #{byol_forward.6} parent=1 // pred_region
      %38 = vsyncadd [#allocation5], 0
      %s39 = sshll.u32 %s5, 4
      %s40 = int_to_ptr.hbm [resolvable:$true] %s39
      %s41 = sshll.u32 [#allocation4], 4
      %s42 = int_to_ptr.vmem [resolvable:$true] %s41
      %47 = dma.hbm_to_vmem [thread:$0]  %s40, 2048, %s42, [#allocation5], 64, 64, 4
    $region25: #{byol_forward.6} parent=1 // pred_fallthru
      _
    // Predicated region
    $region26: #{byol_forward.6} parent=1 // pred_check
      _
    $region27: #{byol_forward.6} parent=1 // pred_check_branch
      %49 = sbr.rel (0) target = $region29
    $region28: #{byol_forward.6} parent=1 // pred_region
      _
    $region29: #{byol_forward.6} parent=1 // pred_fallthru
      _
    // Predicated region
    $region30: #{byol_forward.6} parent=1 // pred_check
      _
    $region31: #{byol_forward.6} parent=1 // pred_check_branch
      %51 = sbr.rel (0) target = $region33
    $region32: #{byol_forward.6} parent=1 // pred_region
      %53 = dma.done [#allocation3], 2048
    $region33: #{byol_forward.6} parent=1 // pred_fallthru
      _
    // Predicated region
    $region34: #{byol_forward.6} parent=1 // pred_check
      _
    $region35: #{byol_forward.6} parent=1 // pred_check_branch
      %55 = sbr.rel (0) target = $region37
    $region36: #{byol_forward.6} parent=1 // pred_region
      %57 = dma.done [#allocation5], 2048
    $region37: #{byol_forward.6} parent=1 // pred_fallthru
      _
    %v58 = vld [vmem:[%s0] sm:$0x3]
    %v59 = vld [vmem:[#allocation2] sm:$0xff]
    %v60 = vld [vmem:[#allocation2 + $0x8] sm:$0xff]
    %v61 = vld [vmem:[#allocation2 + $0x10] sm:$0xff]
    %v62 = vld [vmem:[#allocation2 + $0x18] sm:$0xff]
    %v63 = vld [vmem:[#allocation2 + $0x20] sm:$0xff]
    %v64 = vld [vmem:[#allocation2 + $0x28] sm:$0xff]
    %v65 = vld [vmem:[#allocation2 + $0x30] sm:$0xff]
    %v66 = vld [vmem:[#allocation2 + $0x38] sm:$0xff]
    %v67 = vld [vmem:[#allocation2 + $0x40] sm:$0xff]
    %v68 = vld [vmem:[#allocation2 + $0x48] sm:$0xff]
    %v69 = vld [vmem:[#allocation2 + $0x50] sm:$0xff]
    %v70 = vld [vmem:[#allocation2 + $0x58] sm:$0xff]
    %v71 = vld [vmem:[#allocation2 + $0x60] sm:$0xff]
    %v72 = vld [vmem:[#allocation2 + $0x68] sm:$0xff]
    %v73 = vld [vmem:[#allocation2 + $0x70] sm:$0xff]
    %v74 = vld [vmem:[#allocation2 + $0x78] sm:$0xff]
    %v75 = vld [vmem:[%s2] sm:$0x3]
    %v77 = vperm.slane %v75, 0
    %v78 = vperm.slane %v75, 1
    %v97 = vunpack.c.l.b16 %v59
    %v98 = vunpack.c.h.b16 %v59
    %v99 = vunpack.c.l.b16 %v60
    %v100 = vunpack.c.h.b16 %v60
    %v101 = vunpack.c.l.b16 %v61
    %v102 = vunpack.c.h.b16 %v61
    %v103 = vunpack.c.l.b16 %v62
    %v104 = vunpack.c.h.b16 %v62
    %v105 = vunpack.c.l.b16 %v63
    %v106 = vunpack.c.h.b16 %v63
    %v107 = vunpack.c.l.b16 %v64
    %v108 = vunpack.c.h.b16 %v64
    %v109 = vunpack.c.l.b16 %v65
    %v110 = vunpack.c.h.b16 %v65
    %v111 = vunpack.c.l.b16 %v66
    %v112 = vunpack.c.h.b16 %v66
    %v113 = vunpack.c.l.b16 %v67
    %v114 = vunpack.c.h.b16 %v67
    %v115 = vunpack.c.l.b16 %v68
    %v116 = vunpack.c.h.b16 %v68
    %v117 = vunpack.c.l.b16 %v69
    %v118 = vunpack.c.h.b16 %v69
    %v119 = vunpack.c.l.b16 %v70
    %v120 = vunpack.c.h.b16 %v70
    %v121 = vunpack.c.l.b16 %v71
    %v122 = vunpack.c.h.b16 %v71
    %v123 = vunpack.c.l.b16 %v72
    %v124 = vunpack.c.h.b16 %v72
    %v125 = vunpack.c.l.b16 %v73
    %v126 = vunpack.c.h.b16 %v73
    %v127 = vunpack.c.l.b16 %v74
    %v128 = vunpack.c.h.b16 %v74
    %v129 = vpack.c.b16 %v99, %v97
    %v130 = vpack.c.b16 %v100, %v98
    %v131 = vpack.c.b16 %v103, %v101
    %v132 = vpack.c.b16 %v104, %v102
    %v133 = vpack.c.b16 %v107, %v105
    %v134 = vpack.c.b16 %v108, %v106
    %v135 = vpack.c.b16 %v111, %v109
    %v136 = vpack.c.b16 %v112, %v110
    %v137 = vpack.c.b16 %v115, %v113
    %v138 = vpack.c.b16 %v116, %v114
    %v139 = vpack.c.b16 %v119, %v117
    %v140 = vpack.c.b16 %v120, %v118
    %v141 = vpack.c.b16 %v123, %v121
    %v142 = vpack.c.b16 %v124, %v122
    %v143 = vpack.c.b16 %v127, %v125
    %v144 = vpack.c.b16 %v128, %v126
    %161 = vmatpush.bf16.msra.mxu0 %v143
    %162 = vmatpush.bf16.msra.mxu0 %v141
    %163 = vmatpush.bf16.msra.mxu0 %v139
    %164 = vmatpush.bf16.msra.mxu0 %v137
    %165 = vmatpush.bf16.msra.mxu0 %v135
    %166 = vmatpush.bf16.msra.mxu0 %v133
    %167 = vmatpush.bf16.msra.mxu0 %v131
    %168 = vmatpush.bf16.msra.mxu0 %v129
    %169 = vmatmul.bf16.gmra.mxu0 %v58
    %v170 = vpop.f32.mrf.mxu0
    %v171 = vadd.f32 %v77, %v170
    %v172 = vpop.f32.mrf.mxu0
    %173 = vdwg.mxu0
    %174 = vmatpush.bf16.msra.mxu0 %v144
    %175 = vmatpush.bf16.msra.mxu0 %v142
    %176 = vmatpush.bf16.msra.mxu0 %v140
    %177 = vmatpush.bf16.msra.mxu0 %v138
    %178 = vmatpush.bf16.msra.mxu0 %v136
    %179 = vmatpush.bf16.msra.mxu0 %v134
    %180 = vmatpush.bf16.msra.mxu0 %v132
    %181 = vmatpush.bf16.msra.mxu0 %v130
    %182 = vmatmul.bf16.gmra.mxu0 %v58
    %v183 = vpop.f32.mrf.mxu0
    %v184 = vadd.f32 %v78, %v183
    %v185 = vpop.f32.mrf.mxu0
    %186 = vdwg.mxu0
    %v187 = vld [vmem:[%s3] sm:$0x3]
    %v188 = vld [vmem:[%s4] sm:$0x3]
    %vm189 = vcmask 1041408
    %v190 = vsel %vm189, %v171, 0.0
    %v191 = vrot.slane %v190, 4
    %v192 = vadd.f32 %v190, %v191
    %v193 = vrot.slane %v192, 2
    %v194 = vadd.f32 %v192, %v193
    %v195 = vrot.slane %v194, 1
    %v196 = vadd.f32 %v194, %v195
    %v197 = vsel %vm189, %v184, 0.0
    %v198 = vrot.slane %v197, 4
    %v199 = vadd.f32 %v197, %v198
    %v200 = vrot.slane %v199, 2
    %v201 = vadd.f32 %v199, %v200
    %v202 = vrot.slane %v201, 1
    %v203 = vadd.f32 %v201, %v202
    %v204 = vrcp.pop 2.0
    %v205 = vmul.f32 2.0, %v204
    %v206 = vsub.f32 1.0, %v205
    %v207 = vmul.f32 %v204, %v206
    %v208 = vadd.f32 %v204, %v207
    %vm209 = vweird.f32 %v204
    %v210 = vsel %vm209, %v204, %v208
    %v211 = vmul.f32 %v196, %v210
    %v212 = vmul.f32 %v203, %v210
    %v213 = vsub.f32 %v171, %v211
    %v214 = vsub.f32 %v184, %v212
    %v215 = vmul.f32 %v213, %v213
    %v216 = vmul.f32 %v214, %v214
    %v217 = vsel %vm189, %v215, 0.0
    %v218 = vrot.slane %v217, 4
    %v219 = vadd.f32 %v217, %v218
    %v220 = vrot.slane %v219, 2
    %v221 = vadd.f32 %v219, %v220
    %v222 = vrot.slane %v221, 1
    %v223 = vadd.f32 %v221, %v222
    %v224 = vsel %vm189, %v216, 0.0
    %v225 = vrot.slane %v224, 4
    %v226 = vadd.f32 %v224, %v225
    %v227 = vrot.slane %v226, 2
    %v228 = vadd.f32 %v226, %v227
    %v229 = vrot.slane %v228, 1
    %v230 = vadd.f32 %v228, %v229
    %v231 = vmul.f32 %v223, %v210
    %v232 = vmul.f32 %v230, %v210
    %v233 = vadd.f32 %v231, 1e-05
    %v234 = vadd.f32 %v232, 1e-05
    %v235 = vrsqrt.pop %v233
    %v236 = vmul.f32 %v235, %v233
    %v237 = vmul.f32 %v236, %v235
    %v238 = vmul.f32 0.5, %v237
    %v239 = vsub.f32 1.5, %v238
    %v240 = vmul.f32 %v235, %v239
    %vm241 = vweird.f32 %v233
    %vm242 = vweird.f32 %v235
    %vm243 = vmor %vm241, %vm242
    %v244 = vsel %vm243, %v235, %v240
    %v245 = vrsqrt.pop %v234
    %v246 = vmul.f32 %v245, %v234
    %v247 = vmul.f32 %v246, %v245
    %v248 = vmul.f32 0.5, %v247
    %v249 = vsub.f32 1.5, %v248
    %v250 = vmul.f32 %v245, %v249
    %vm251 = vweird.f32 %v234
    %vm252 = vweird.f32 %v245
    %vm253 = vmor %vm251, %vm252
    %v254 = vsel %vm253, %v245, %v250
    %v255 = vmul.f32 %v213, %v244
    %v256 = vmul.f32 %v214, %v254
    %v258 = vperm.slane %v187, 0
    %v259 = vperm.slane %v187, 1
    %v262 = vmul.f32 %v255, %v258
    %v263 = vmul.f32 %v256, %v259
    %v265 = vperm.slane %v188, 0
    %v266 = vperm.slane %v188, 1
    %v269 = vadd.f32 %v262, %v265
    %v270 = vadd.f32 %v263, %v266
    %v271 = vmax.f32 %v269, 0.0
    %v272 = vmax.f32 %v270, 0.0
    %v275 = vrot.slane %v171, 2
    %v276 = vrot.slane %v184, 2
    %v279 = vsel %vm189, %v275, 0.0
    %v280 = vrot.slane %v279, 4
    %v281 = vadd.f32 %v279, %v280
    %v282 = vrot.slane %v281, 2
    %v283 = vadd.f32 %v281, %v282
    %v284 = vrot.slane %v283, 1
    %v285 = vadd.f32 %v283, %v284
    %v286 = vsel %vm189, %v276, 0.0
    %v287 = vrot.slane %v286, 4
    %v288 = vadd.f32 %v286, %v287
    %v289 = vrot.slane %v288, 2
    %v290 = vadd.f32 %v288, %v289
    %v291 = vrot.slane %v290, 1
    %v292 = vadd.f32 %v290, %v291
    %v293 = vmul.f32 %v285, %v210
    %v294 = vmul.f32 %v292, %v210
    %v295 = vsub.f32 %v171, %v293
    %v296 = vsub.f32 %v184, %v294
    %v297 = vmul.f32 %v295, %v295
    %v298 = vmul.f32 %v296, %v296
    %v301 = vrot.slane %v297, 2
    %v302 = vrot.slane %v298, 2
    %v305 = vsel %vm189, %v301, 0.0
    %v306 = vrot.slane %v305, 4
    %v307 = vadd.f32 %v305, %v306
    %v308 = vrot.slane %v307, 2
    %v309 = vadd.f32 %v307, %v308
    %v310 = vrot.slane %v309, 1
    %v311 = vadd.f32 %v309, %v310
    %v312 = vsel %vm189, %v302, 0.0
    %v313 = vrot.slane %v312, 4
    %v314 = vadd.f32 %v312, %v313
    %v315 = vrot.slane %v314, 2
    %v316 = vadd.f32 %v314, %v315
    %v317 = vrot.slane %v316, 1
    %v318 = vadd.f32 %v316, %v317
    %v319 = vmul.f32 %v311, %v210
    %v320 = vmul.f32 %v318, %v210
    %v321 = vadd.f32 %v319, 1e-05
    %v322 = vadd.f32 %v320, 1e-05
    %v323 = vrsqrt.pop %v321
    %v324 = vmul.f32 %v323, %v321
    %v325 = vmul.f32 %v324, %v323
    %v326 = vmul.f32 0.5, %v325
    %v327 = vsub.f32 1.5, %v326
    %v328 = vmul.f32 %v323, %v327
    %vm329 = vweird.f32 %v321
    %vm330 = vweird.f32 %v323
    %vm331 = vmor %vm329, %vm330
    %v332 = vsel %vm331, %v323, %v328
    %v333 = vrsqrt.pop %v322
    %v334 = vmul.f32 %v333, %v322
    %v335 = vmul.f32 %v334, %v333
    %v336 = vmul.f32 0.5, %v335
    %v337 = vsub.f32 1.5, %v336
    %v338 = vmul.f32 %v333, %v337
    %vm339 = vweird.f32 %v322
    %vm340 = vweird.f32 %v333
    %vm341 = vmor %vm339, %vm340
    %v342 = vsel %vm341, %v333, %v338
    %v343 = vmul.f32 %v295, %v332
    %v344 = vmul.f32 %v296, %v342
    %v345 = vmul.f32 %v343, %v258
    %v346 = vmul.f32 %v344, %v259
    %v347 = vadd.f32 %v345, %v265
    %v348 = vadd.f32 %v346, %v266
    %v349 = vmax.f32 %v347, 0.0
    %v350 = vmax.f32 %v348, 0.0
    %v351 = vsel %vm189, %v271, %v349
    %v352 = vsel %vm189, %v272, %v350
    %v353 = vpack.c.bf16 %v351, %v351
    %v354 = vpack.c.bf16 %v352, %v352
    %v355 = vld [vmem:[#allocation4] sm:$0xf]
    %v356 = vld [vmem:[#allocation4 + $0x4] sm:$0xf]
    %v357 = vld [vmem:[#allocation4 + $0x8] sm:$0xf]
    %v358 = vld [vmem:[#allocation4 + $0xc] sm:$0xf]
    %v359 = vld [vmem:[#allocation4 + $0x10] sm:$0xf]
    %v360 = vld [vmem:[#allocation4 + $0x14] sm:$0xf]
    %v361 = vld [vmem:[#allocation4 + $0x18] sm:$0xf]
    %v362 = vld [vmem:[#allocation4 + $0x1c] sm:$0xf]
    %v363 = vld [vmem:[#allocation4 + $0x20] sm:$0xf]
    %v364 = vld [vmem:[#allocation4 + $0x24] sm:$0xf]
    %v365 = vld [vmem:[#allocation4 + $0x28] sm:$0xf]
    %v366 = vld [vmem:[#allocation4 + $0x2c] sm:$0xf]
    %v367 = vld [vmem:[#allocation4 + $0x30] sm:$0xf]
    %v368 = vld [vmem:[#allocation4 + $0x34] sm:$0xf]
    %v369 = vld [vmem:[#allocation4 + $0x38] sm:$0xf]
    %v370 = vld [vmem:[#allocation4 + $0x3c] sm:$0xf]
    %v371 = vld [vmem:[#allocation4 + $0x40] sm:$0xf]
    %v372 = vld [vmem:[#allocation4 + $0x44] sm:$0xf]
    %v373 = vld [vmem:[#allocation4 + $0x48] sm:$0xf]
    %v374 = vld [vmem:[#allocation4 + $0x4c] sm:$0xf]
    %v375 = vld [vmem:[#allocation4 + $0x50] sm:$0xf]
    %v376 = vld [vmem:[#allocation4 + $0x54] sm:$0xf]
    %v377 = vld [vmem:[#allocation4 + $0x58] sm:$0xf]
    %v378 = vld [vmem:[#allocation4 + $0x5c] sm:$0xf]
    %v379 = vld [vmem:[#allocation4 + $0x60] sm:$0xf]
    %v380 = vld [vmem:[#allocation4 + $0x64] sm:$0xf]
    %v381 = vld [vmem:[#allocation4 + $0x68] sm:$0xf]
    %v382 = vld [vmem:[#allocation4 + $0x6c] sm:$0xf]
    %v383 = vld [vmem:[#allocation4 + $0x70] sm:$0xf]
    %v384 = vld [vmem:[#allocation4 + $0x74] sm:$0xf]
    %v385 = vld [vmem:[#allocation4 + $0x78] sm:$0xf]
    %v386 = vld [vmem:[#allocation4 + $0x7c] sm:$0xf]
    %v387 = vld [vmem:[%s6] sm:$0x1]
    %v389 = vperm.slane %v387, 0
    %v423 = vunpack.c.l.b16 %v355
    %v424 = vunpack.c.l.b16 %v356
    %v425 = vunpack.c.l.b16 %v357
    %v426 = vunpack.c.l.b16 %v358
    %v427 = vunpack.c.l.b16 %v359
    %v428 = vunpack.c.l.b16 %v360
    %v429 = vunpack.c.l.b16 %v361
    %v430 = vunpack.c.l.b16 %v362
    %v431 = vunpack.c.l.b16 %v363
    %v432 = vunpack.c.l.b16 %v364
    %v433 = vunpack.c.l.b16 %v365
    %v434 = vunpack.c.l.b16 %v366
    %v435 = vunpack.c.l.b16 %v367
    %v436 = vunpack.c.l.b16 %v368
    %v437 = vunpack.c.l.b16 %v369
    %v438 = vunpack.c.l.b16 %v370
    %v439 = vunpack.c.l.b16 %v371
    %v440 = vunpack.c.l.b16 %v372
    %v441 = vunpack.c.l.b16 %v373
    %v442 = vunpack.c.l.b16 %v374
    %v443 = vunpack.c.l.b16 %v375
    %v444 = vunpack.c.l.b16 %v376
    %v445 = vunpack.c.l.b16 %v377
    %v446 = vunpack.c.l.b16 %v378
    %v447 = vunpack.c.l.b16 %v379
    %v448 = vunpack.c.l.b16 %v380
    %v449 = vunpack.c.l.b16 %v381
    %v450 = vunpack.c.l.b16 %v382
    %v451 = vunpack.c.l.b16 %v383
    %v452 = vunpack.c.l.b16 %v384
    %v453 = vunpack.c.l.b16 %v385
    %v454 = vunpack.c.l.b16 %v386
    %v455 = vpack.c.b16 %v424, %v423
    %v456 = vpack.c.b16 %v426, %v425
    %v457 = vpack.c.b16 %v428, %v427
    %v458 = vpack.c.b16 %v430, %v429
    %v459 = vpack.c.b16 %v432, %v431
    %v460 = vpack.c.b16 %v434, %v433
    %v461 = vpack.c.b16 %v436, %v435
    %v462 = vpack.c.b16 %v438, %v437
    %v463 = vpack.c.b16 %v440, %v439
    %v464 = vpack.c.b16 %v442, %v441
    %v465 = vpack.c.b16 %v444, %v443
    %v466 = vpack.c.b16 %v446, %v445
    %v467 = vpack.c.b16 %v448, %v447
    %v468 = vpack.c.b16 %v450, %v449
    %v469 = vpack.c.b16 %v452, %v451
    %v470 = vpack.c.b16 %v454, %v453
    %487 = vmatpush.bf16.msra.mxu0 %v462
    %488 = vmatpush.bf16.msra.mxu0 %v461
    %489 = vmatpush.bf16.msra.mxu0 %v460
    %490 = vmatpush.bf16.msra.mxu0 %v459
    %491 = vmatpush.bf16.msra.mxu0 %v458
    %492 = vmatpush.bf16.msra.mxu0 %v457
    %493 = vmatpush.bf16.msra.mxu0 %v456
    %494 = vmatpush.bf16.msra.mxu0 %v455
    %495 = vmatmul.bf16.gmra.mxu0 %v353
    %v496 = vpop.f32.mrf.mxu0
    %v497 = vadd.f32 %v389, %v496
    %v498 = vpop.f32.mrf.mxu0
    %499 = vdwg.mxu0
    %500 = vmatpush.bf16.msra.mxu0 %v470
    %501 = vmatpush.bf16.msra.mxu0 %v469
    %502 = vmatpush.bf16.msra.mxu0 %v468
    %503 = vmatpush.bf16.msra.mxu0 %v467
    %504 = vmatpush.bf16.msra.mxu0 %v466
    %505 = vmatpush.bf16.msra.mxu0 %v465
    %506 = vmatpush.bf16.msra.mxu0 %v464
    %507 = vmatpush.bf16.msra.mxu0 %v463
    %508 = vmatmul.bf16.gmra.mxu0 %v354
    %v509 = vpop.f32.mrf.mxu0
    %v510 = vadd.f32 %v497, %v509
    %v511 = vpop.f32.mrf.mxu0
    %512 = vdwg.mxu0
    %v513 = vpack.c.bf16 %v510, %v510
    %514 = vst [vmem:[%s7] sm:$0x3] %v513
    // Predicated region
    $region38: #{byol_forward.6} parent=1 // pred_check
      _
    $region39: #{byol_forward.6} parent=1 // pred_check_branch
      %516 = sbr.rel (0) target = $region41
    $region40: #{byol_forward.6} parent=1 // pred_region
      _
    $region41: #{byol_forward.6} parent=1 // pred_fallthru
      _
    // Predicated region
    $region42: #{byol_forward.6} parent=1 // pred_check
      _
    $region43: #{byol_forward.6} parent=1 // pred_check_branch
      %518 = sbr.rel (0) target = $region45
    $region44: #{byol_forward.6} parent=1 // pred_region
      _
    $region45: #{byol_forward.6} parent=1 // pred_fallthru
      _
    %519 = vsyncpa [#allocation3], 1
    %520 = vsyncpa [#allocation5], 1

// kernel: byol_forward.5
$region0: #{byol_forward.5}
  #allocation0 [shape = 'u32[]', space=smem, size = 0x4, offset = 0x4, fixed_abs, tag = 'smem constant byte address 0x4 - core index']
  #allocation1 [shape = 'u32[72,128]{1,0:T(1,128)}', space=vmem, size = 0x9000, scoped, tag = 'internal scratch']
  %s0 = inlined_call_operand.vmem [shape: bf16[4,512], index: 0, kind: input, shape index: {}]
  %s1 = inlined_call_operand.hbm [shape: bf16[512,256], index: 1, kind: input, shape index: {}]
  %s2 = inlined_call_operand.vmem [shape: f32[1,256], index: 2, kind: input, shape index: {}]
  %s3 = inlined_call_operand.vmem [shape: f32[1,256], index: 3, kind: input, shape index: {}]
  %s4 = inlined_call_operand.vmem [shape: f32[1,256], index: 4, kind: input, shape index: {}]
  %s5 = inlined_call_operand.vmem [shape: bf16[256,128], index: 5, kind: input, shape index: {}]
  %s6 = inlined_call_operand.vmem [shape: f32[1,128], index: 6, kind: input, shape index: {}]
  %s7 = inlined_call_operand.vmem [shape: bf16[4,128], index: 7, kind: output, shape index: {}]
  %s8 = sld [smem:[#allocation0]]
  $region42: #{byol_forward.5} parent=0
    _
  %s10 = ssub.s32 1, %s8
  %s11 = scalar_select 0, %s10, %s8
  $region1: #{byol_forward.5} parent=0
    #allocation2 [shape = 'u8[262144]{0}', space=vmem, size = 0x40000, scoped, tag = 'input window, operand 1, single buffered']
    #allocation3 [shape = 's32[1]{0}', space=sflag, size = 0x4, scoped, tag = 'scoped memory for byol_forward.5']
    %12 = vsyncpa [#allocation3], 0
    // Predicated region
    $region2: #{byol_forward.5} parent=1 // pred_check
      _
    $region3: #{byol_forward.5} parent=1 // pred_check_branch
      %14 = sbr.rel (0) target = $region5
    $region4: #{byol_forward.5} parent=1 // pred_region
      _
    $region5: #{byol_forward.5} parent=1 // pred_fallthru
      _
    // Predicated region
    $region6: #{byol_forward.5} parent=1 // pred_check
      _
    $region7: #{byol_forward.5} parent=1 // pred_check_branch
      %16 = sbr.rel (0) target = $region9
    $region8: #{byol_forward.5} parent=1 // pred_region
      %18 = vsyncadd [#allocation3], 0
      %s19 = sshll.u32 %s1, 4
      %s20 = int_to_ptr.hbm [resolvable:$true] %s19
      %s21 = sshll.u32 [#allocation2], 4
      %s22 = int_to_ptr.vmem [resolvable:$true] %s21
      %27 = dma.hbm_to_vmem [thread:$0]  %s20, 8192, %s22, [#allocation3], 128, 128, 8
    $region9: #{byol_forward.5} parent=1 // pred_fallthru
      _
    // Predicated region
    $region10: #{byol_forward.5} parent=1 // pred_check
      _
    $region11: #{byol_forward.5} parent=1 // pred_check_branch
      %29 = sbr.rel (0) target = $region13
    $region12: #{byol_forward.5} parent=1 // pred_region
      _
    $region13: #{byol_forward.5} parent=1 // pred_fallthru
      _
    // Predicated region
    $region14: #{byol_forward.5} parent=1 // pred_check
      _
    $region15: #{byol_forward.5} parent=1 // pred_check_branch
      %31 = sbr.rel (0) target = $region17
    $region16: #{byol_forward.5} parent=1 // pred_region
      _
    $region17: #{byol_forward.5} parent=1 // pred_fallthru
      _
    // Predicated region
    $region18: #{byol_forward.5} parent=1 // pred_check
      _
    $region19: #{byol_forward.5} parent=1 // pred_check_branch
      %33 = sbr.rel (0) target = $region21
    $region20: #{byol_forward.5} parent=1 // pred_region
      _
    $region21: #{byol_forward.5} parent=1 // pred_fallthru
      _
    // Predicated region
    $region22: #{byol_forward.5} parent=1 // pred_check
      _
    $region23: #{byol_forward.5} parent=1 // pred_check_branch
      %35 = sbr.rel (0) target = $region25
    $region24: #{byol_forward.5} parent=1 // pred_region
      _
    $region25: #{byol_forward.5} parent=1 // pred_fallthru
      _
    // Predicated region
    $region26: #{byol_forward.5} parent=1 // pred_check
      _
    $region27: #{byol_forward.5} parent=1 // pred_check_branch
      %37 = sbr.rel (0) target = $region29
    $region28: #{byol_forward.5} parent=1 // pred_region
      _
    $region29: #{byol_forward.5} parent=1 // pred_fallthru
      _
    // Predicated region
    $region30: #{byol_forward.5} parent=1 // pred_check
      _
    $region31: #{byol_forward.5} parent=1 // pred_check_branch
      %39 = sbr.rel (0) target = $region33
    $region32: #{byol_forward.5} parent=1 // pred_region
      %41 = dma.done [#allocation3], 8192
    $region33: #{byol_forward.5} parent=1 // pred_fallthru
      _
    %v42 = vld [vmem:[%s0] sm:$0xff]
    %v43 = vld [vmem:[#allocation2] sm:$0xff]
    %v44 = vld [vmem:[#allocation2 + $0x8] sm:$0xff]
    %v45 = vld [vmem:[#allocation2 + $0x10] sm:$0xff]
    %v46 = vld [vmem:[#allocation2 + $0x18] sm:$0xff]
    %v47 = vld [vmem:[#allocation2 + $0x20] sm:$0xff]
    %v48 = vld [vmem:[#allocation2 + $0x28] sm:$0xff]
    %v49 = vld [vmem:[#allocation2 + $0x30] sm:$0xff]
    %v50 = vld [vmem:[#allocation2 + $0x38] sm:$0xff]
    %v51 = vld [vmem:[#allocation2 + $0x40] sm:$0xff]
    %v52 = vld [vmem:[#allocation2 + $0x48] sm:$0xff]
    %v53 = vld [vmem:[#allocation2 + $0x50] sm:$0xff]
    %v54 = vld [vmem:[#allocation2 + $0x58] sm:$0xff]
    %v55 = vld [vmem:[#allocation2 + $0x60] sm:$0xff]
    %v56 = vld [vmem:[#allocation2 + $0x68] sm:$0xff]
    %v57 = vld [vmem:[#allocation2 + $0x70] sm:$0xff]
    %v58 = vld [vmem:[#allocation2 + $0x78] sm:$0xff]
    %v59 = vld [vmem:[#allocation2 + $0x80] sm:$0xff]
    %v60 = vld [vmem:[#allocation2 + $0x88] sm:$0xff]
    %v61 = vld [vmem:[#allocation2 + $0x90] sm:$0xff]
    %v62 = vld [vmem:[#allocation2 + $0x98] sm:$0xff]
    %v63 = vld [vmem:[#allocation2 + $0xa0] sm:$0xff]
    %v64 = vld [vmem:[#allocation2 + $0xa8] sm:$0xff]
    %v65 = vld [vmem:[#allocation2 + $0xb0] sm:$0xff]
    %v66 = vld [vmem:[#allocation2 + $0xb8] sm:$0xff]
    %v67 = vld [vmem:[#allocation2 + $0xc0] sm:$0xff]
    %v68 = vld [vmem:[#allocation2 + $0xc8] sm:$0xff]
    %v69 = vld [vmem:[#allocation2 + $0xd0] sm:$0xff]
    %v70 = vld [vmem:[#allocation2 + $0xd8] sm:$0xff]
    %v71 = vld [vmem:[#allocation2 + $0xe0] sm:$0xff]
    %v72 = vld [vmem:[#allocation2 + $0xe8] sm:$0xff]
    %v73 = vld [vmem:[#allocation2 + $0xf0] sm:$0xff]
    %v74 = vld [vmem:[#allocation2 + $0xf8] sm:$0xff]
    %v75 = vld [vmem:[#allocation2 + $0x100] sm:$0xff]
    %v76 = vld [vmem:[#allocation2 + $0x108] sm:$0xff]
    %v77 = vld [vmem:[#allocation2 + $0x110] sm:$0xff]
    %v78 = vld [vmem:[#allocation2 + $0x118] sm:$0xff]
    %v79 = vld [vmem:[#allocation2 + $0x120] sm:$0xff]
    %v80 = vld [vmem:[#allocation2 + $0x128] sm:$0xff]
    %v81 = vld [vmem:[#allocation2 + $0x130] sm:$0xff]
    %v82 = vld [vmem:[#allocation2 + $0x138] sm:$0xff]
    %v83 = vld [vmem:[#allocation2 + $0x140] sm:$0xff]
    %v84 = vld [vmem:[#allocation2 + $0x148] sm:$0xff]
    %v85 = vld [vmem:[#allocation2 + $0x150] sm:$0xff]
    %v86 = vld [vmem:[#allocation2 + $0x158] sm:$0xff]
    %v87 = vld [vmem:[#allocation2 + $0x160] sm:$0xff]
    %v88 = vld [vmem:[#allocation2 + $0x168] sm:$0xff]
    %v89 = vld [vmem:[#allocation2 + $0x170] sm:$0xff]
    %v90 = vld [vmem:[#allocation2 + $0x178] sm:$0xff]
    %v91 = vld [vmem:[#allocation2 + $0x180] sm:$0xff]
    %v92 = vld [vmem:[#allocation2 + $0x188] sm:$0xff]
    %v93 = vld [vmem:[#allocation2 + $0x190] sm:$0xff]
    %v94 = vld [vmem:[#allocation2 + $0x198] sm:$0xff]
    %v95 = vld [vmem:[#allocation2 + $0x1a0] sm:$0xff]
    %v96 = vld [vmem:[#allocation2 + $0x1a8] sm:$0xff]
    %v97 = vld [vmem:[#allocation2 + $0x1b0] sm:$0xff]
    %v98 = vld [vmem:[#allocation2 + $0x1b8] sm:$0xff]
    %v99 = vld [vmem:[#allocation2 + $0x1c0] sm:$0xff]
    %v100 = vld [vmem:[#allocation2 + $0x1c8] sm:$0xff]
    %v101 = vld [vmem:[#allocation2 + $0x1d0] sm:$0xff]
    %v102 = vld [vmem:[#allocation2 + $0x1d8] sm:$0xff]
    %v103 = vld [vmem:[#allocation2 + $0x1e0] sm:$0xff]
    %v104 = vld [vmem:[#allocation2 + $0x1e8] sm:$0xff]
    %v105 = vld [vmem:[#allocation2 + $0x1f0] sm:$0xff]
    %v106 = vld [vmem:[#allocation2 + $0x1f8] sm:$0xff]
    %v107 = vld [vmem:[%s2] sm:$0x3]
    %v109 = vperm.slane %v107, 0
    %v110 = vperm.slane %v107, 1
    %114 = vst [vmem:[#allocation1] ss:$4 sm:$0xff] %v42
    %v115 = vld.sshfl [vmem:[#allocation1] sm:$0xff pattern:$0x73625140]
    %v116 = vld.sshfl [vmem:[#allocation1 + $0x8] sm:$0xff pattern:$0x73625140]
    %v117 = vld.sshfl [vmem:[#allocation1 + $0x10] sm:$0xff pattern:$0x73625140]
    %v118 = vld.sshfl [vmem:[#allocation1 + $0x18] sm:$0xff pattern:$0x73625140]
    %v187 = vunpack.c.l.b16 %v43
    %v188 = vunpack.c.h.b16 %v43
    %v189 = vunpack.c.l.b16 %v44
    %v190 = vunpack.c.h.b16 %v44
    %v191 = vunpack.c.l.b16 %v45
    %v192 = vunpack.c.h.b16 %v45
    %v193 = vunpack.c.l.b16 %v46
    %v194 = vunpack.c.h.b16 %v46
    %v195 = vunpack.c.l.b16 %v47
    %v196 = vunpack.c.h.b16 %v47
    %v197 = vunpack.c.l.b16 %v48
    %v198 = vunpack.c.h.b16 %v48
    %v199 = vunpack.c.l.b16 %v49
    %v200 = vunpack.c.h.b16 %v49
    %v201 = vunpack.c.l.b16 %v50
    %v202 = vunpack.c.h.b16 %v50
    %v203 = vunpack.c.l.b16 %v51
    %v204 = vunpack.c.h.b16 %v51
    %v205 = vunpack.c.l.b16 %v52
    %v206 = vunpack.c.h.b16 %v52
    %v207 = vunpack.c.l.b16 %v53
    %v208 = vunpack.c.h.b16 %v53
    %v209 = vunpack.c.l.b16 %v54
    %v210 = vunpack.c.h.b16 %v54
    %v211 = vunpack.c.l.b16 %v55
    %v212 = vunpack.c.h.b16 %v55
    %v213 = vunpack.c.l.b16 %v56
    %v214 = vunpack.c.h.b16 %v56
    %v215 = vunpack.c.l.b16 %v57
    %v216 = vunpack.c.h.b16 %v57
    %v217 = vunpack.c.l.b16 %v58
    %v218 = vunpack.c.h.b16 %v58
    %v219 = vunpack.c.l.b16 %v59
    %v220 = vunpack.c.h.b16 %v59
    %v221 = vunpack.c.l.b16 %v60
    %v222 = vunpack.c.h.b16 %v60
    %v223 = vunpack.c.l.b16 %v61
    %v224 = vunpack.c.h.b16 %v61
    %v225 = vunpack.c.l.b16 %v62
    %v226 = vunpack.c.h.b16 %v62
    %v227 = vunpack.c.l.b16 %v63
    %v228 = vunpack.c.h.b16 %v63
    %v229 = vunpack.c.l.b16 %v64
    %v230 = vunpack.c.h.b16 %v64
    %v231 = vunpack.c.l.b16 %v65
    %v232 = vunpack.c.h.b16 %v65
    %v233 = vunpack.c.l.b16 %v66
    %v234 = vunpack.c.h.b16 %v66
    %v235 = vunpack.c.l.b16 %v67
    %v236 = vunpack.c.h.b16 %v67
    %v237 = vunpack.c.l.b16 %v68
    %v238 = vunpack.c.h.b16 %v68
    %v239 = vunpack.c.l.b16 %v69
    %v240 = vunpack.c.h.b16 %v69
    %v241 = vunpack.c.l.b16 %v70
    %v242 = vunpack.c.h.b16 %v70
    %v243 = vunpack.c.l.b16 %v71
    %v244 = vunpack.c.h.b16 %v71
    %v245 = vunpack.c.l.b16 %v72
    %v246 = vunpack.c.h.b16 %v72
    %v247 = vunpack.c.l.b16 %v73
    %v248 = vunpack.c.h.b16 %v73
    %v249 = vunpack.c.l.b16 %v74
    %v250 = vunpack.c.h.b16 %v74
    %v251 = vunpack.c.l.b16 %v75
    %v252 = vunpack.c.h.b16 %v75
    %v253 = vunpack.c.l.b16 %v76
    %v254 = vunpack.c.h.b16 %v76
    %v255 = vunpack.c.l.b16 %v77
    %v256 = vunpack.c.h.b16 %v77
    %v257 = vunpack.c.l.b16 %v78
    %v258 = vunpack.c.h.b16 %v78
    %v259 = vunpack.c.l.b16 %v79
    %v260 = vunpack.c.h.b16 %v79
    %v261 = vunpack.c.l.b16 %v80
    %v262 = vunpack.c.h.b16 %v80
    %v263 = vunpack.c.l.b16 %v81
    %v264 = vunpack.c.h.b16 %v81
    %v265 = vunpack.c.l.b16 %v82
    %v266 = vunpack.c.h.b16 %v82
    %v267 = vunpack.c.l.b16 %v83
    %v268 = vunpack.c.h.b16 %v83
    %v269 = vunpack.c.l.b16 %v84
    %v270 = vunpack.c.h.b16 %v84
    %v271 = vunpack.c.l.b16 %v85
    %v272 = vunpack.c.h.b16 %v85
    %v273 = vunpack.c.l.b16 %v86
    %v274 = vunpack.c.h.b16 %v86
    %v275 = vunpack.c.l.b16 %v87
    %v276 = vunpack.c.h.b16 %v87
    %v277 = vunpack.c.l.b16 %v88
    %v278 = vunpack.c.h.b16 %v88
    %v279 = vunpack.c.l.b16 %v89
    %v280 = vunpack.c.h.b16 %v89
    %v281 = vunpack.c.l.b16 %v90
    %v282 = vunpack.c.h.b16 %v90
    %v283 = vunpack.c.l.b16 %v91
    %v284 = vunpack.c.h.b16 %v91
    %v285 = vunpack.c.l.b16 %v92
    %v286 = vunpack.c.h.b16 %v92
    %v287 = vunpack.c.l.b16 %v93
    %v288 = vunpack.c.h.b16 %v93
    %v289 = vunpack.c.l.b16 %v94
    %v290 = vunpack.c.h.b16 %v94
    %v291 = vunpack.c.l.b16 %v95
    %v292 = vunpack.c.h.b16 %v95
    %v293 = vunpack.c.l.b16 %v96
    %v294 = vunpack.c.h.b16 %v96
    %v295 = vunpack.c.l.b16 %v97
    %v296 = vunpack.c.h.b16 %v97
    %v297 = vunpack.c.l.b16 %v98
    %v298 = vunpack.c.h.b16 %v98
    %v299 = vunpack.c.l.b16 %v99
    %v300 = vunpack.c.h.b16 %v99
    %v301 = vunpack.c.l.b16 %v100
    %v302 = vunpack.c.h.b16 %v100
    %v303 = vunpack.c.l.b16 %v101
    %v304 = vunpack.c.h.b16 %v101
    %v305 = vunpack.c.l.b16 %v102
    %v306 = vunpack.c.h.b16 %v102
    %v307 = vunpack.c.l.b16 %v103
    %v308 = vunpack.c.h.b16 %v103
    %v309 = vunpack.c.l.b16 %v104
    %v310 = vunpack.c.h.b16 %v104
    %v311 = vunpack.c.l.b16 %v105
    %v312 = vunpack.c.h.b16 %v105
    %v313 = vunpack.c.l.b16 %v106
    %v314 = vunpack.c.h.b16 %v106
    %v315 = vpack.c.b16 %v189, %v187
    %v316 = vpack.c.b16 %v190, %v188
    %v317 = vpack.c.b16 %v193, %v191
    %v318 = vpack.c.b16 %v194, %v192
    %v319 = vpack.c.b16 %v197, %v195
    %v320 = vpack.c.b16 %v198, %v196
    %v321 = vpack.c.b16 %v201, %v199
    %v322 = vpack.c.b16 %v202, %v200
    %v323 = vpack.c.b16 %v205, %v203
    %v324 = vpack.c.b16 %v206, %v204
    %v325 = vpack.c.b16 %v209, %v207
    %v326 = vpack.c.b16 %v210, %v208
    %v327 = vpack.c.b16 %v213, %v211
    %v328 = vpack.c.b16 %v214, %v212
    %v329 = vpack.c.b16 %v217, %v215
    %v330 = vpack.c.b16 %v218, %v216
    %v331 = vpack.c.b16 %v221, %v219
    %v332 = vpack.c.b16 %v222, %v220
    %v333 = vpack.c.b16 %v225, %v223
    %v334 = vpack.c.b16 %v226, %v224
    %v335 = vpack.c.b16 %v229, %v227
    %v336 = vpack.c.b16 %v230, %v228
    %v337 = vpack.c.b16 %v233, %v231
    %v338 = vpack.c.b16 %v234, %v232
    %v339 = vpack.c.b16 %v237, %v235
    %v340 = vpack.c.b16 %v238, %v236
    %v341 = vpack.c.b16 %v241, %v239
    %v342 = vpack.c.b16 %v242, %v240
    %v343 = vpack.c.b16 %v245, %v243
    %v344 = vpack.c.b16 %v246, %v244
    %v345 = vpack.c.b16 %v249, %v247
    %v346 = vpack.c.b16 %v250, %v248
    %v347 = vpack.c.b16 %v253, %v251
    %v348 = vpack.c.b16 %v254, %v252
    %v349 = vpack.c.b16 %v257, %v255
    %v350 = vpack.c.b16 %v258, %v256
    %v351 = vpack.c.b16 %v261, %v259
    %v352 = vpack.c.b16 %v262, %v260
    %v353 = vpack.c.b16 %v265, %v263
    %v354 = vpack.c.b16 %v266, %v264
    %v355 = vpack.c.b16 %v269, %v267
    %v356 = vpack.c.b16 %v270, %v268
    %v357 = vpack.c.b16 %v273, %v271
    %v358 = vpack.c.b16 %v274, %v272
    %v359 = vpack.c.b16 %v277, %v275
    %v360 = vpack.c.b16 %v278, %v276
    %v361 = vpack.c.b16 %v281, %v279
    %v362 = vpack.c.b16 %v282, %v280
    %v363 = vpack.c.b16 %v285, %v283
    %v364 = vpack.c.b16 %v286, %v284
    %v365 = vpack.c.b16 %v289, %v287
    %v366 = vpack.c.b16 %v290, %v288
    %v367 = vpack.c.b16 %v293, %v291
    %v368 = vpack.c.b16 %v294, %v292
    %v369 = vpack.c.b16 %v297, %v295
    %v370 = vpack.c.b16 %v298, %v296
    %v371 = vpack.c.b16 %v301, %v299
    %v372 = vpack.c.b16 %v302, %v300
    %v373 = vpack.c.b16 %v305, %v303
    %v374 = vpack.c.b16 %v306, %v304
    %v375 = vpack.c.b16 %v309, %v307
    %v376 = vpack.c.b16 %v310, %v308
    %v377 = vpack.c.b16 %v313, %v311
    %v378 = vpack.c.b16 %v314, %v312
    %443 = vmatpush.bf16.msra.mxu0 %v329
    %444 = vmatpush.bf16.msra.mxu0 %v327
    %445 = vmatpush.bf16.msra.mxu0 %v325
    %446 = vmatpush.bf16.msra.mxu0 %v323
    %447 = vmatpush.bf16.msra.mxu0 %v321
    %448 = vmatpush.bf16.msra.mxu0 %v319
    %449 = vmatpush.bf16.msra.mxu0 %v317
    %450 = vmatpush.bf16.msra.mxu0 %v315
    %451 = vmatmul.bf16.gmra.mxu0 %v115
    %v452 = vpop.f32.mrf.mxu0
    %v453 = vadd.f32 %v109, %v452
    %v454 = vpop.f32.mrf.mxu0
    %455 = vdwg.mxu0
    %456 = vmatpush.bf16.msra.mxu0 %v345
    %457 = vmatpush.bf16.msra.mxu0 %v343
    %458 = vmatpush.bf16.msra.mxu0 %v341
    %459 = vmatpush.bf16.msra.mxu0 %v339
    %460 = vmatpush.bf16.msra.mxu0 %v337
    %461 = vmatpush.bf16.msra.mxu0 %v335
    %462 = vmatpush.bf16.msra.mxu0 %v333
    %463 = vmatpush.bf16.msra.mxu0 %v331
    %464 = vmatmul.bf16.gmra.mxu0 %v116
    %v465 = vpop.f32.mrf.mxu0
    %v466 = vadd.f32 %v453, %v465
    %v467 = vpop.f32.mrf.mxu0
    %468 = vdwg.mxu0
    %469 = vmatpush.bf16.msra.mxu0 %v361
    %470 = vmatpush.bf16.msra.mxu0 %v359
    %471 = vmatpush.bf16.msra.mxu0 %v357
    %472 = vmatpush.bf16.msra.mxu0 %v355
    %473 = vmatpush.bf16.msra.mxu0 %v353
    %474 = vmatpush.bf16.msra.mxu0 %v351
    %475 = vmatpush.bf16.msra.mxu0 %v349
    %476 = vmatpush.bf16.msra.mxu0 %v347
    %477 = vmatmul.bf16.gmra.mxu0 %v117
    %v478 = vpop.f32.mrf.mxu0
    %v479 = vadd.f32 %v466, %v478
    %v480 = vpop.f32.mrf.mxu0
    %481 = vdwg.mxu0
    %482 = vmatpush.bf16.msra.mxu0 %v377
    %483 = vmatpush.bf16.msra.mxu0 %v375
    %484 = vmatpush.bf16.msra.mxu0 %v373
    %485 = vmatpush.bf16.msra.mxu0 %v371
    %486 = vmatpush.bf16.msra.mxu0 %v369
    %487 = vmatpush.bf16.msra.mxu0 %v367
    %488 = vmatpush.bf16.msra.mxu0 %v365
    %489 = vmatpush.bf16.msra.mxu0 %v363
    %490 = vmatmul.bf16.gmra.mxu0 %v118
    %v491 = vpop.f32.mrf.mxu0
    %v492 = vadd.f32 %v479, %v491
    %v493 = vpop.f32.mrf.mxu0
    %494 = vdwg.mxu0
    %495 = vmatpush.bf16.msra.mxu0 %v330
    %496 = vmatpush.bf16.msra.mxu0 %v328
    %497 = vmatpush.bf16.msra.mxu0 %v326
    %498 = vmatpush.bf16.msra.mxu0 %v324
    %499 = vmatpush.bf16.msra.mxu0 %v322
    %500 = vmatpush.bf16.msra.mxu0 %v320
    %501 = vmatpush.bf16.msra.mxu0 %v318
    %502 = vmatpush.bf16.msra.mxu0 %v316
    %503 = vmatmul.bf16.gmra.mxu0 %v115
    %v504 = vpop.f32.mrf.mxu0
    %v505 = vadd.f32 %v110, %v504
    %v506 = vpop.f32.mrf.mxu0
    %507 = vdwg.mxu0
    %508 = vmatpush.bf16.msra.mxu0 %v346
    %509 = vmatpush.bf16.msra.mxu0 %v344
    %510 = vmatpush.bf16.msra.mxu0 %v342
    %511 = vmatpush.bf16.msra.mxu0 %v340
    %512 = vmatpush.bf16.msra.mxu0 %v338
    %513 = vmatpush.bf16.msra.mxu0 %v336
    %514 = vmatpush.bf16.msra.mxu0 %v334
    %515 = vmatpush.bf16.msra.mxu0 %v332
    %516 = vmatmul.bf16.gmra.mxu0 %v116
    %v517 = vpop.f32.mrf.mxu0
    %v518 = vadd.f32 %v505, %v517
    %v519 = vpop.f32.mrf.mxu0
    %520 = vdwg.mxu0
    %521 = vmatpush.bf16.msra.mxu0 %v362
    %522 = vmatpush.bf16.msra.mxu0 %v360
    %523 = vmatpush.bf16.msra.mxu0 %v358
    %524 = vmatpush.bf16.msra.mxu0 %v356
    %525 = vmatpush.bf16.msra.mxu0 %v354
    %526 = vmatpush.bf16.msra.mxu0 %v352
    %527 = vmatpush.bf16.msra.mxu0 %v350
    %528 = vmatpush.bf16.msra.mxu0 %v348
    %529 = vmatmul.bf16.gmra.mxu0 %v117
    %v530 = vpop.f32.mrf.mxu0
    %v531 = vadd.f32 %v518, %v530
    %v532 = vpop.f32.mrf.mxu0
    %533 = vdwg.mxu0
    %534 = vmatpush.bf16.msra.mxu0 %v378
    %535 = vmatpush.bf16.msra.mxu0 %v376
    %536 = vmatpush.bf16.msra.mxu0 %v374
    %537 = vmatpush.bf16.msra.mxu0 %v372
    %538 = vmatpush.bf16.msra.mxu0 %v370
    %539 = vmatpush.bf16.msra.mxu0 %v368
    %540 = vmatpush.bf16.msra.mxu0 %v366
    %541 = vmatpush.bf16.msra.mxu0 %v364
    %542 = vmatmul.bf16.gmra.mxu0 %v118
    %v543 = vpop.f32.mrf.mxu0
    %v544 = vadd.f32 %v531, %v543
    %v545 = vpop.f32.mrf.mxu0
    %546 = vdwg.mxu0
    %v547 = vld [vmem:[%s3] sm:$0x3]
    %v548 = vld [vmem:[%s4] sm:$0x3]
    %vm549 = vcmask 1041408
    %v550 = vsel %vm549, %v492, 0.0
    %v551 = vrot.slane %v550, 4
    %v552 = vadd.f32 %v550, %v551
    %v553 = vrot.slane %v552, 2
    %v554 = vadd.f32 %v552, %v553
    %v555 = vrot.slane %v554, 1
    %v556 = vadd.f32 %v554, %v555
    %v557 = vsel %vm549, %v544, 0.0
    %v558 = vrot.slane %v557, 4
    %v559 = vadd.f32 %v557, %v558
    %v560 = vrot.slane %v559, 2
    %v561 = vadd.f32 %v559, %v560
    %v562 = vrot.slane %v561, 1
    %v563 = vadd.f32 %v561, %v562
    %v564 = vrcp.pop 2.0
    %v565 = vmul.f32 2.0, %v564
    %v566 = vsub.f32 1.0, %v565
    %v567 = vmul.f32 %v564, %v566
    %v568 = vadd.f32 %v564, %v567
    %vm569 = vweird.f32 %v564
    %v570 = vsel %vm569, %v564, %v568
    %v571 = vmul.f32 %v556, %v570
    %v572 = vmul.f32 %v563, %v570
    %v573 = vsub.f32 %v492, %v571
    %v574 = vsub.f32 %v544, %v572
    %v575 = vmul.f32 %v573, %v573
    %v576 = vmul.f32 %v574, %v574
    %v577 = vsel %vm549, %v575, 0.0
    %v578 = vrot.slane %v577, 4
    %v579 = vadd.f32 %v577, %v578
    %v580 = vrot.slane %v579, 2
    %v581 = vadd.f32 %v579, %v580
    %v582 = vrot.slane %v581, 1
    %v583 = vadd.f32 %v581, %v582
    %v584 = vsel %vm549, %v576, 0.0
    %v585 = vrot.slane %v584, 4
    %v586 = vadd.f32 %v584, %v585
    %v587 = vrot.slane %v586, 2
    %v588 = vadd.f32 %v586, %v587
    %v589 = vrot.slane %v588, 1
    %v590 = vadd.f32 %v588, %v589
    %v591 = vmul.f32 %v583, %v570
    %v592 = vmul.f32 %v590, %v570
    %v593 = vadd.f32 %v591, 1e-05
    %v594 = vadd.f32 %v592, 1e-05
    %v595 = vrsqrt.pop %v593
    %v596 = vmul.f32 %v595, %v593
    %v597 = vmul.f32 %v596, %v595
    %v598 = vmul.f32 0.5, %v597
    %v599 = vsub.f32 1.5, %v598
    %v600 = vmul.f32 %v595, %v599
    %vm601 = vweird.f32 %v593
    %vm602 = vweird.f32 %v595
    %vm603 = vmor %vm601, %vm602
    %v604 = vsel %vm603, %v595, %v600
    %v605 = vrsqrt.pop %v594
    %v606 = vmul.f32 %v605, %v594
    %v607 = vmul.f32 %v606, %v605
    %v608 = vmul.f32 0.5, %v607
    %v609 = vsub.f32 1.5, %v608
    %v610 = vmul.f32 %v605, %v609
    %vm611 = vweird.f32 %v594
    %vm612 = vweird.f32 %v605
    %vm613 = vmor %vm611, %vm612
    %v614 = vsel %vm613, %v605, %v610
    %v615 = vmul.f32 %v573, %v604
    %v616 = vmul.f32 %v574, %v614
    %v618 = vperm.slane %v547, 0
    %v619 = vperm.slane %v547, 1
    %v622 = vmul.f32 %v615, %v618
    %v623 = vmul.f32 %v616, %v619
    %v625 = vperm.slane %v548, 0
    %v626 = vperm.slane %v548, 1
    %v629 = vadd.f32 %v622, %v625
    %v630 = vadd.f32 %v623, %v626
    %v631 = vmax.f32 %v629, 0.0
    %v632 = vmax.f32 %v630, 0.0
    %v635 = vrot.slane %v492, 2
    %v636 = vrot.slane %v544, 2
    %v639 = vsel %vm549, %v635, 0.0
    %v640 = vrot.slane %v639, 4
    %v641 = vadd.f32 %v639, %v640
    %v642 = vrot.slane %v641, 2
    %v643 = vadd.f32 %v641, %v642
    %v644 = vrot.slane %v643, 1
    %v645 = vadd.f32 %v643, %v644
    %v646 = vsel %vm549, %v636, 0.0
    %v647 = vrot.slane %v646, 4
    %v648 = vadd.f32 %v646, %v647
    %v649 = vrot.slane %v648, 2
    %v650 = vadd.f32 %v648, %v649
    %v651 = vrot.slane %v650, 1
    %v652 = vadd.f32 %v650, %v651
    %v653 = vmul.f32 %v645, %v570
    %v654 = vmul.f32 %v652, %v570
    %v655 = vsub.f32 %v492, %v653
    %v656 = vsub.f32 %v544, %v654
    %v657 = vmul.f32 %v655, %v655
    %v658 = vmul.f32 %v656, %v656
    %v661 = vrot.slane %v657, 2
    %v662 = vrot.slane %v658, 2
    %v665 = vsel %vm549, %v661, 0.0
    %v666 = vrot.slane %v665, 4
    %v667 = vadd.f32 %v665, %v666
    %v668 = vrot.slane %v667, 2
    %v669 = vadd.f32 %v667, %v668
    %v670 = vrot.slane %v669, 1
    %v671 = vadd.f32 %v669, %v670
    %v672 = vsel %vm549, %v662, 0.0
    %v673 = vrot.slane %v672, 4
    %v674 = vadd.f32 %v672, %v673
    %v675 = vrot.slane %v674, 2
    %v676 = vadd.f32 %v674, %v675
    %v677 = vrot.slane %v676, 1
    %v678 = vadd.f32 %v676, %v677
    %v679 = vmul.f32 %v671, %v570
    %v680 = vmul.f32 %v678, %v570
    %v681 = vadd.f32 %v679, 1e-05
    %v682 = vadd.f32 %v680, 1e-05
    %v683 = vrsqrt.pop %v681
    %v684 = vmul.f32 %v683, %v681
    %v685 = vmul.f32 %v684, %v683
    %v686 = vmul.f32 0.5, %v685
    %v687 = vsub.f32 1.5, %v686
    %v688 = vmul.f32 %v683, %v687
    %vm689 = vweird.f32 %v681
    %vm690 = vweird.f32 %v683
    %vm691 = vmor %vm689, %vm690
    %v692 = vsel %vm691, %v683, %v688
    %v693 = vrsqrt.pop %v682
    %v694 = vmul.f32 %v693, %v682
    %v695 = vmul.f32 %v694, %v693
    %v696 = vmul.f32 0.5, %v695
    %v697 = vsub.f32 1.5, %v696
    %v698 = vmul.f32 %v693, %v697
    %vm699 = vweird.f32 %v682
    %vm700 = vweird.f32 %v693
    %vm701 = vmor %vm699, %vm700
    %v702 = vsel %vm701, %v693, %v698
    %v703 = vmul.f32 %v655, %v692
    %v704 = vmul.f32 %v656, %v702
    %v705 = vmul.f32 %v703, %v618
    %v706 = vmul.f32 %v704, %v619
    %v707 = vadd.f32 %v705, %v625
    %v708 = vadd.f32 %v706, %v626
    %v709 = vmax.f32 %v707, 0.0
    %v710 = vmax.f32 %v708, 0.0
    %v711 = vsel %vm549, %v631, %v709
    %v712 = vsel %vm549, %v632, %v710
    %v713 = vpack.c.bf16 %v711, %v711
    %v714 = vpack.c.bf16 %v712, %v712
    %v715 = vld [vmem:[%s5] sm:$0xf]
    %v716 = vld [vmem:[%s5 + $0x4] sm:$0xf]
    %v717 = vld [vmem:[%s5 + $0x8] sm:$0xf]
    %v718 = vld [vmem:[%s5 + $0xc] sm:$0xf]
    %v719 = vld [vmem:[%s5 + $0x10] sm:$0xf]
    %v720 = vld [vmem:[%s5 + $0x14] sm:$0xf]
    %v721 = vld [vmem:[%s5 + $0x18] sm:$0xf]
    %v722 = vld [vmem:[%s5 + $0x1c] sm:$0xf]
    %v723 = vld [vmem:[%s5 + $0x20] sm:$0xf]
    %v724 = vld [vmem:[%s5 + $0x24] sm:$0xf]
    %v725 = vld [vmem:[%s5 + $0x28] sm:$0xf]
    %v726 = vld [vmem:[%s5 + $0x2c] sm:$0xf]
    %v727 = vld [vmem:[%s5 + $0x30] sm:$0xf]
    %v728 = vld [vmem:[%s5 + $0x34] sm:$0xf]
    %v729 = vld [vmem:[%s5 + $0x38] sm:$0xf]
    %v730 = vld [vmem:[%s5 + $0x3c] sm:$0xf]
    %v731 = vld [vmem:[%s5 + $0x40] sm:$0xf]
    %v732 = vld [vmem:[%s5 + $0x44] sm:$0xf]
    %v733 = vld [vmem:[%s5 + $0x48] sm:$0xf]
    %v734 = vld [vmem:[%s5 + $0x4c] sm:$0xf]
    %v735 = vld [vmem:[%s5 + $0x50] sm:$0xf]
    %v736 = vld [vmem:[%s5 + $0x54] sm:$0xf]
    %v737 = vld [vmem:[%s5 + $0x58] sm:$0xf]
    %v738 = vld [vmem:[%s5 + $0x5c] sm:$0xf]
    %v739 = vld [vmem:[%s5 + $0x60] sm:$0xf]
    %v740 = vld [vmem:[%s5 + $0x64] sm:$0xf]
    %v741 = vld [vmem:[%s5 + $0x68] sm:$0xf]
    %v742 = vld [vmem:[%s5 + $0x6c] sm:$0xf]
    %v743 = vld [vmem:[%s5 + $0x70] sm:$0xf]
    %v744 = vld [vmem:[%s5 + $0x74] sm:$0xf]
    %v745 = vld [vmem:[%s5 + $0x78] sm:$0xf]
    %v746 = vld [vmem:[%s5 + $0x7c] sm:$0xf]
    %v747 = vld [vmem:[%s6] sm:$0x1]
    %v749 = vperm.slane %v747, 0
    %v783 = vunpack.c.l.b16 %v715
    %v784 = vunpack.c.l.b16 %v716
    %v785 = vunpack.c.l.b16 %v717
    %v786 = vunpack.c.l.b16 %v718
    %v787 = vunpack.c.l.b16 %v719
    %v788 = vunpack.c.l.b16 %v720
    %v789 = vunpack.c.l.b16 %v721
    %v790 = vunpack.c.l.b16 %v722
    %v791 = vunpack.c.l.b16 %v723
    %v792 = vunpack.c.l.b16 %v724
    %v793 = vunpack.c.l.b16 %v725
    %v794 = vunpack.c.l.b16 %v726
    %v795 = vunpack.c.l.b16 %v727
    %v796 = vunpack.c.l.b16 %v728
    %v797 = vunpack.c.l.b16 %v729
    %v798 = vunpack.c.l.b16 %v730
    %v799 = vunpack.c.l.b16 %v731
    %v800 = vunpack.c.l.b16 %v732
    %v801 = vunpack.c.l.b16 %v733
    %v802 = vunpack.c.l.b16 %v734
    %v803 = vunpack.c.l.b16 %v735
    %v804 = vunpack.c.l.b16 %v736
    %v805 = vunpack.c.l.b16 %v737
    %v806 = vunpack.c.l.b16 %v738
    %v807 = vunpack.c.l.b16 %v739
    %v808 = vunpack.c.l.b16 %v740
    %v809 = vunpack.c.l.b16 %v741
    %v810 = vunpack.c.l.b16 %v742
    %v811 = vunpack.c.l.b16 %v743
    %v812 = vunpack.c.l.b16 %v744
    %v813 = vunpack.c.l.b16 %v745
    %v814 = vunpack.c.l.b16 %v746
    %v815 = vpack.c.b16 %v784, %v783
    %v816 = vpack.c.b16 %v786, %v785
    %v817 = vpack.c.b16 %v788, %v787
    %v818 = vpack.c.b16 %v790, %v789
    %v819 = vpack.c.b16 %v792, %v791
    %v820 = vpack.c.b16 %v794, %v793
    %v821 = vpack.c.b16 %v796, %v795
    %v822 = vpack.c.b16 %v798, %v797
    %v823 = vpack.c.b16 %v800, %v799
    %v824 = vpack.c.b16 %v802, %v801
    %v825 = vpack.c.b16 %v804, %v803
    %v826 = vpack.c.b16 %v806, %v805
    %v827 = vpack.c.b16 %v808, %v807
    %v828 = vpack.c.b16 %v810, %v809
    %v829 = vpack.c.b16 %v812, %v811
    %v830 = vpack.c.b16 %v814, %v813
    %847 = vmatpush.bf16.msra.mxu0 %v822
    %848 = vmatpush.bf16.msra.mxu0 %v821
    %849 = vmatpush.bf16.msra.mxu0 %v820
    %850 = vmatpush.bf16.msra.mxu0 %v819
    %851 = vmatpush.bf16.msra.mxu0 %v818
    %852 = vmatpush.bf16.msra.mxu0 %v817
    %853 = vmatpush.bf16.msra.mxu0 %v816
    %854 = vmatpush.bf16.msra.mxu0 %v815
    %855 = vmatmul.bf16.gmra.mxu0 %v713
    %v856 = vpop.f32.mrf.mxu0
    %v857 = vadd.f32 %v749, %v856
    %v858 = vpop.f32.mrf.mxu0
    %859 = vdwg.mxu0
    %860 = vmatpush.bf16.msra.mxu0 %v830
    %861 = vmatpush.bf16.msra.mxu0 %v829
    %862 = vmatpush.bf16.msra.mxu0 %v828
    %863 = vmatpush.bf16.msra.mxu0 %v827
    %864 = vmatpush.bf16.msra.mxu0 %v826
    %865 = vmatpush.bf16.msra.mxu0 %v825
    %866 = vmatpush.bf16.msra.mxu0 %v824
    %867 = vmatpush.bf16.msra.mxu0 %v823
    %868 = vmatmul.bf16.gmra.mxu0 %v714
    %v869 = vpop.f32.mrf.mxu0
    %v870 = vadd.f32 %v857, %v869
    %v871 = vpop.f32.mrf.mxu0
    %872 = vdwg.mxu0
    %v873 = vpack.c.bf16 %v870, %v870
    %874 = vst [vmem:[%s7] sm:$0x3] %v873
    // Predicated region
    $region34: #{byol_forward.5} parent=1 // pred_check
      _
    $region35: #{byol_forward.5} parent=1 // pred_check_branch
      %876 = sbr.rel (0) target = $region37
    $region36: #{byol_forward.5} parent=1 // pred_region
      _
    $region37: #{byol_forward.5} parent=1 // pred_fallthru
      _
    // Predicated region
    $region38: #{byol_forward.5} parent=1 // pred_check
      _
    $region39: #{byol_forward.5} parent=1 // pred_check_branch
      %878 = sbr.rel (0) target = $region41
    $region40: #{byol_forward.5} parent=1 // pred_region
      _
    $region41: #{byol_forward.5} parent=1 // pred_fallthru
      _
    %879 = vsyncpa [#allocation3], 1

// kernel: byol_forward.4
$region0: #{byol_forward.4}
  #allocation0 [shape = 'u32[]', space=smem, size = 0x4, offset = 0x4, fixed_abs, tag = 'smem constant byte address 0x4 - core index']
  #allocation1 [shape = 'u32[72,128]{1,0:T(1,128)}', space=vmem, size = 0x9000, scoped, tag = 'internal scratch']
  #allocation2 [shape = 'f32[4,256]{1,0:T(4,128)}', space=vmem, size = 0x1000, scoped, tag = 'scratch operand']
  %s0 = inlined_call_operand.vmem [shape: f32[4,1024], index: 0, kind: input, shape index: {}]
  %s1 = inlined_call_operand.hbm [shape: bf16[1024,512], index: 1, kind: input, shape index: {}]
  %s2 = inlined_call_operand.vmem [shape: f32[1,512], index: 2, kind: input, shape index: {}]
  %s3 = inlined_call_operand.vmem [shape: bf16[4,512], index: 3, kind: output, shape index: {}]
  %s4 = sld [smem:[#allocation0]]
  $region57: #{byol_forward.4} parent=0
    _
  %s6 = ssub.s32 1, %s4
  %s7 = scalar_select 0, %s6, %s4
  $region1: #{byol_forward.4} parent=0
    #allocation3 [shape = 'u8[1048576]{0}', space=vmem, size = 0x100000, scoped, tag = 'input window, operand 1']
    #allocation4 [shape = 's32[2]{0}', space=sflag, size = 0x8, scoped, tag = 'scoped memory for byol_forward.4']
    %8 = vsyncpa [#allocation4], 0
    %s9 = scalar_lea.sflag [#allocation4], 1
    %10 = vsyncpa %s9, 0
    loop: start=0, step=1, limit=4
    $region2: #{byol_forward.4} parent=1 // loop_pre_header
      _
    $region3: #{byol_forward.4} parent=1 // loop_header
      %s12 = sphi 0, %s16
      %p13 = scmp.ge.s32.totalorder %s12, 4
      %s19 = sphi 0, %s38
      %s20 = sphi 0, %s34
      %s21 = sphi 0, %s30
      %s22 = sphi 0, %s19
      %s23 = sphi 0, %s20
      %s24 = sphi 0, %s21
      %s25 = sphi 0, %s22
      %s26 = sphi 0, %s23
      %s27 = sphi 0, %s24
      %s43 = sphi 0, %s45
      %s46 = sphi 0, %s43
      %s47 = sphi 0, %s46
      %s63 = sphi 0, %s47
      %s71 = sphi 0, %s73
      %s74 = sphi 0, %s71
      %s75 = sphi 0, %s74
      %s91 = sphi 0, %s75
      %s97 = sphi 0, %s99
      %s100 = sphi 0, %s97
      %s101 = sphi 0, %s100
      %s117 = sphi 0, %s101
      %s125 = sphi 0, %s127
      %s128 = sphi 0, %s125
      %s129 = sphi 0, %s128
      %s145 = sphi 0, %s129
    $region4: #{byol_forward.4} parent=1 // loop_header_branch
      %15 = sbr.rel (%p13) target = $region8
    $region5: #{byol_forward.4} parent=1 // loop_body
      %s17 = ssub.s32 %s12, 1
      %s18 = ssub.s32 %s12, 2
      %s28 = sadd.s32 1, %s21
      %p29 = scmp.ge.s32.totalorder %s28, 1
      %s30 = scalar_select %p29, 0, %s28
      %s31 = sadd.s32 1, %s20
      %s32 = scalar_select %p29, %s31, %s20
      %p33 = scmp.ge.s32.totalorder %s32, 2
      %s34 = scalar_select %p33, 0, %s32
      %s35 = sadd.s32 1, %s19
      %s36 = scalar_select %p33, %s35, %s19
      %p37 = scmp.ge.s32.totalorder %s36, 1
      %s38 = scalar_select %p37, 0, %s36
      %s39 = ssub.s32 %s19, %s38
      %s40 = ssub.s32 %s21, %s30
      %s41 = sor.u32 %s39, %s40
      %p42 = scmp.eq.s32.totalorder %s41, 0
      %s44 = sadd.s32 %s43, 1
      %s45 = scalar_select %p42, %s43, %s44
      %p48 = pneg %p42
      %p49 = scmp.eq.s32.totalorder %s12, 1
      %p50 = por %p48, %p49
      %p51 = scmp.ne.s32.totalorder %s43, %s46
      %p52 = scmp.eq.s32.totalorder %s12, 0
      %p53 = por %p51, %p52
      %p54 = scmp.ne.s32.totalorder %s43, %s46
      %p55 = scmp.eq.s32.totalorder %s17, 1
      %p56 = por %p54, %p55
      %p57 = scmp.ne.s32.totalorder %s46, %s47
      %p58 = scmp.eq.s32.totalorder %s17, 0
      %p59 = por %p57, %p58
      %p60 = scmp.ne.s32.totalorder %s46, %s47
      %p61 = scmp.eq.s32.totalorder %s18, 1
      %p62 = por %p60, %p61
      %p64 = scmp.ne.s32.totalorder %s47, %s63
      %p65 = scmp.eq.s32.totalorder %s18, 0
      %p66 = por %p64, %p65
      %s67 = ssub.s32 %s21, %s30
      %s68 = ssub.s32 %s20, %s34
      %s69 = sor.u32 %s67, %s68
      %p70 = scmp.eq.s32.totalorder %s69, 0
      %s72 = sadd.s32 %s71, 1
      %s73 = scalar_select %p70, %s71, %s72
      %p76 = pneg %p70
      %p77 = scmp.eq.s32.totalorder %s12, 1
      %p78 = por %p76, %p77
      %p79 = scmp.ne.s32.totalorder %s71, %s74
      %p80 = scmp.eq.s32.totalorder %s12, 0
      %p81 = por %p79, %p80
      %p82 = scmp.ne.s32.totalorder %s71, %s74
      %p83 = scmp.eq.s32.totalorder %s17, 1
      %p84 = por %p82, %p83
      %p85 = scmp.ne.s32.totalorder %s74, %s75
      %p86 = scmp.eq.s32.totalorder %s17, 0
      %p87 = por %p85, %p86
      %p88 = scmp.ne.s32.totalorder %s74, %s75
      %p89 = scmp.eq.s32.totalorder %s18, 1
      %p90 = por %p88, %p89
      %p92 = scmp.ne.s32.totalorder %s75, %s91
      %p93 = scmp.eq.s32.totalorder %s18, 0
      %p94 = por %p92, %p93
      %s95 = ssub.s32 %s20, %s34
      %p96 = scmp.eq.s32.totalorder %s95, 0
      %s98 = sadd.s32 %s97, 1
      %s99 = scalar_select %p96, %s97, %s98
      %p102 = pneg %p96
      %p103 = scmp.eq.s32.totalorder %s12, 1
      %p104 = por %p102, %p103
      %p105 = scmp.ne.s32.totalorder %s97, %s100
      %p106 = scmp.eq.s32.totalorder %s12, 0
      %p107 = por %p105, %p106
      %p108 = scmp.ne.s32.totalorder %s97, %s100
      %p109 = scmp.eq.s32.totalorder %s17, 1
      %p110 = por %p108, %p109
      %p111 = scmp.ne.s32.totalorder %s100, %s101
      %p112 = scmp.eq.s32.totalorder %s17, 0
      %p113 = por %p111, %p112
      %p114 = scmp.ne.s32.totalorder %s100, %s101
      %p115 = scmp.eq.s32.totalorder %s18, 1
      %p116 = por %p114, %p115
      %p118 = scmp.ne.s32.totalorder %s101, %s117
      %p119 = scmp.eq.s32.totalorder %s18, 0
      %p120 = por %p118, %p119
      %s121 = ssub.s32 %s19, %s38
      %s122 = ssub.s32 %s20, %s34
      %s123 = sor.u32 %s121, %s122
      %p124 = scmp.eq.s32.totalorder %s123, 0
      %s126 = sadd.s32 %s125, 1
      %s127 = scalar_select %p124, %s125, %s126
      %p130 = pneg %p124
      %p131 = scmp.eq.s32.totalorder %s12, 1
      %p132 = por %p130, %p131
      %p133 = scmp.ne.s32.totalorder %s125, %s128
      %p134 = scmp.eq.s32.totalorder %s12, 0
      %p135 = por %p133, %p134
      %p136 = scmp.ne.s32.totalorder %s125, %s128
      %p137 = scmp.eq.s32.totalorder %s17, 1
      %p138 = por %p136, %p137
      %p139 = scmp.ne.s32.totalorder %s128, %s129
      %p140 = scmp.eq.s32.totalorder %s17, 0
      %p141 = por %p139, %p140
      %p142 = scmp.ne.s32.totalorder %s128, %s129
      %p143 = scmp.eq.s32.totalorder %s18, 1
      %p144 = por %p142, %p143
      %p146 = scmp.ne.s32.totalorder %s129, %s145
      %p147 = scmp.eq.s32.totalorder %s18, 0
      %p148 = por %p146, %p147
      %p149 = scmp.le.s32.totalorder 1, %s12
      %p150 = scmp.lt.s32.totalorder %s12, 3
      %p151 = pnand %p149, %p150
      %p152 = pneg %p151
      // Predicated region
      $region9: #{byol_forward.4} parent=5 // pred_check
        _
      $region10: #{byol_forward.4} parent=5 // pred_check_branch
        %154 = sbr.rel (%p151) target = $region12
      $region11: #{byol_forward.4} parent=5 // pred_region
        %s155 = ssub.s32 %s12, 1
        // Predicated region
        $region13: #{byol_forward.4} parent=11 // pred_check
          %p156 = pneg %p59
        $region14: #{byol_forward.4} parent=11 // pred_check_branch
          %158 = sbr.rel (%p156) target = $region16
        $region15: #{byol_forward.4} parent=11 // pred_region
          %s159 = smul.u32 8, %s24
          %p160 = scmp.lt.s32.totalorder %s22, 0
          %s161 = scalar_select %p160, %s22, 0
          %p162 = scmp.lt.s32.totalorder %s159, 7
          %s163 = scalar_select %p162, %s159, 7
          %s164 = smul.addr %s161, 8
          %s165 = sadd.s32 %s163, %s164
          %s166 = smul.addr %s165, 4
          %s167 = scalar_lea.vmem %s0, %s166
          %s168 = smul.u32 8, %s24
        $region16: #{byol_forward.4} parent=11 // pred_fallthru
          _
      $region12: #{byol_forward.4} parent=5 // pred_fallthru
        _
      %p169 = scmp.lt.s32.totalorder %s12, 2
      // Predicated region
      $region17: #{byol_forward.4} parent=5 // pred_check
        %p170 = pneg %p169
      $region18: #{byol_forward.4} parent=5 // pred_check_branch
        %172 = sbr.rel (%p170) target = $region20
      $region19: #{byol_forward.4} parent=5 // pred_region
        // Predicated region
        $region21: #{byol_forward.4} parent=19 // pred_check
          %p173 = pneg %p81
        $region22: #{byol_forward.4} parent=19 // pred_check_branch
          %175 = sbr.rel (%p173) target = $region24
        $region23: #{byol_forward.4} parent=19 // pred_region
          %s176 = sand.u32 %s71, 1
          %s177 = scalar_lea.sflag [#allocation4], %s176
          %s178 = sand.u32 %s71, 1
          %s179 = smul.addr %s178, 1024
          %s180 = scalar_lea.vmem [#allocation3], %s179
          %s181 = smul.u32 128, %s21
          %s182 = smul.u32 2, %s20
          %184 = vsyncadd %s177, 0
          %s185 = smul.addr %s181, 4
          %s186 = sadd.s32 %s182, %s185
          %s187 = smul.addr %s186, 4
          %s188 = scalar_lea.hbm %s1, %s187
          %s189 = sshll.u32 %s188, 4
          %s190 = int_to_ptr.hbm [resolvable:$true] %s189
          %s191 = sshll.u32 %s180, 4
          %s192 = int_to_ptr.vmem [resolvable:$true] %s191
          %197 = dma.hbm_to_vmem [thread:$0]  %s190, 16384, %s192, %s177, 256, 128, 8
        $region24: #{byol_forward.4} parent=19 // pred_fallthru
          _
        // Predicated region
        $region25: #{byol_forward.4} parent=19 // pred_check
          %p198 = pneg %p107
        $region26: #{byol_forward.4} parent=19 // pred_check_branch
          %200 = sbr.rel (%p198) target = $region28
        $region27: #{byol_forward.4} parent=19 // pred_region
          %s201 = smul.u32 2, %s20
          %p202 = scmp.lt.s32.totalorder %s201, 3
          %s203 = scalar_select %p202, %s201, 3
          %s204 = scalar_lea.vmem %s2, %s203
          %s205 = smul.u32 2, %s20
        $region28: #{byol_forward.4} parent=19 // pred_fallthru
          _
      $region20: #{byol_forward.4} parent=5 // pred_fallthru
        _
      %p206 = scmp.le.s32.totalorder 1, %s12
      %p207 = scmp.lt.s32.totalorder %s12, 3
      %p208 = pnand %p206, %p207
      %p209 = pneg %p208
      // Predicated region
      $region29: #{byol_forward.4} parent=5 // pred_check
        _
      $region30: #{byol_forward.4} parent=5 // pred_check_branch
        %211 = sbr.rel (%p208) target = $region32
      $region31: #{byol_forward.4} parent=5 // pred_region
        %s212 = ssub.s32 %s12, 1
        %s213 = sand.u32 %s74, 1
        %s214 = scalar_lea.sflag [#allocation4], %s213
        %s215 = sand.u32 %s74, 1
        %s216 = smul.addr %s215, 1024
        %s217 = scalar_lea.vmem [#allocation3], %s216
        // Predicated region
        $region33: #{byol_forward.4} parent=31 // pred_check
          %p218 = pneg %p87
        $region34: #{byol_forward.4} parent=31 // pred_check_branch
          %220 = sbr.rel (%p218) target = $region36
        $region35: #{byol_forward.4} parent=31 // pred_region
          %222 = dma.done %s214, 16384
        $region36: #{byol_forward.4} parent=31 // pred_fallthru
          _
        %s223 = smul.u32 8, %s24
        %p224 = scmp.lt.s32.totalorder %s22, 0
        %s225 = scalar_select %p224, %s22, 0
        %p226 = scmp.lt.s32.totalorder %s223, 7
        %s227 = scalar_select %p226, %s223, 7
        %s228 = smul.addr %s225, 8
        %s229 = sadd.s32 %s227, %s228
        %s230 = smul.addr %s229, 4
        %s231 = scalar_lea.vmem %s0, %s230
        %p232 = pneg %p59
        %p233 = pneg %p56
        %s234 = sand.u32 %s74, 1
        %s235 = scalar_lea.sflag [#allocation4], %s234
        %s236 = sand.u32 %s74, 1
        %s237 = smul.addr %s236, 1024
        %s238 = scalar_lea.vmem [#allocation3], %s237
        %p239 = pneg %p87
        %p240 = pneg %p84
        %s241 = smul.u32 2, %s23
        %p242 = scmp.lt.s32.totalorder %s241, 3
        %s243 = scalar_select %p242, %s241, 3
        %s244 = scalar_lea.vmem %s2, %s243
        %p245 = pneg %p113
        %p246 = pneg %p110
        %p247 = pneg %p141
        %p248 = pneg %p138
        %s249 = smul.u32 2, %s23
        %p250 = scmp.lt.s32.totalorder %s22, 0
        %s251 = scalar_select %p250, %s22, 0
        %p252 = scmp.lt.s32.totalorder %s249, 3
        %s253 = scalar_select %p252, %s249, 3
        %s254 = smul.addr %s251, 4
        %s255 = sadd.s32 %s253, %s254
        %s256 = smul.addr %s255, 2
        %s257 = scalar_lea.vmem %s3, %s256
        %s258 = smul.u32 8, %s24
        %p259 = scmp.lt.s32.totalorder %s22, 0
        %s260 = scalar_select %p259, %s22, 0
        %p261 = scmp.lt.s32.totalorder %s258, 7
        %s262 = scalar_select %p261, %s258, 7
        %s263 = smul.addr %s260, 8
        %s264 = sadd.s32 %s262, %s263
        %s265 = smul.addr %s264, 4
        %s266 = scalar_lea.vmem %s0, %s265
        %s267 = smul.u32 8, %s24
        %s268 = smul.u32 128, %s24
        %s269 = smul.u32 2, %s23
        %s270 = smul.u32 2, %s23
        %p271 = scmp.lt.s32.totalorder %s270, 3
        %s272 = scalar_select %p271, %s270, 3
        %s273 = scalar_lea.vmem %s2, %s272
        %s274 = smul.u32 2, %s23
        %s275 = smul.u32 2, %s23
        %p276 = scmp.lt.s32.totalorder %s22, 0
        %s277 = scalar_select %p276, %s22, 0
        %p278 = scmp.lt.s32.totalorder %s275, 3
        %s279 = scalar_select %p278, %s275, 3
        %s280 = smul.addr %s277, 4
        %s281 = sadd.s32 %s279, %s280
        %s282 = smul.addr %s281, 2
        %s283 = scalar_lea.vmem %s3, %s282
        %s284 = smul.u32 2, %s23
        %p285 = scmp.eq.s32.totalorder %s24, 0
        // Predicated region
        $region37: #{byol_forward.4} parent=31 // pred_check
          %p286 = pneg %p285
        $region38: #{byol_forward.4} parent=31 // pred_check_branch
          %288 = sbr.rel (%p286) target = $region40
        $region39: #{byol_forward.4} parent=31 // pred_region
          %289 = vst [vmem:[#allocation2] sm:$0xff] 0.0
        $region40: #{byol_forward.4} parent=31 // pred_fallthru
          _
        %v290 = vld [vmem:[#allocation2] sm:$0xff]
        %v291 = vld [vmem:[%s266] sm:$0xff]
        %v292 = vld [vmem:[%s266 + $0x8] sm:$0xff]
        %v293 = vld [vmem:[%s266 + $0x10] sm:$0xff]
        %v294 = vld [vmem:[%s266 + $0x18] sm:$0xff]
        %299 = vst [vmem:[#allocation1] ss:$2 sm:$0xff] %v291
        %s300 = scalar_lea.vmem [#allocation1], 16
        %301 = vst [vmem:[%s300] ss:$2 sm:$0xff] %v292
        %s302 = scalar_lea.vmem [#allocation1], 32
        %303 = vst [vmem:[%s302] ss:$2 sm:$0xff] %v293
        %s304 = scalar_lea.vmem [#allocation1], 48
        %305 = vst [vmem:[%s304] ss:$2 sm:$0xff] %v294
        %v306 = vld.sshfl [vmem:[#allocation1] sm:$0xff pattern:$0x75316420]
        %v307 = vld.sshfl [vmem:[#allocation1 + $0x8] sm:$0xff pattern:$0x75316420]
        %v308 = vld.sshfl [vmem:[#allocation1 + $0x10] sm:$0xff pattern:$0x75316420]
        %v309 = vld.sshfl [vmem:[#allocation1 + $0x18] sm:$0xff pattern:$0x75316420]
        %v310 = vld.sshfl [vmem:[#allocation1 + $0x20] sm:$0xff pattern:$0x75316420]
        %v311 = vld.sshfl [vmem:[#allocation1 + $0x28] sm:$0xff pattern:$0x75316420]
        %v312 = vld.sshfl [vmem:[#allocation1 + $0x30] sm:$0xff pattern:$0x75316420]
        %v313 = vld.sshfl [vmem:[#allocation1 + $0x38] sm:$0xff pattern:$0x75316420]
        %v322 = vpack.c.bf16 %v306, %v306
        %v323 = vpack.c.bf16 %v307, %v307
        %v324 = vpack.c.bf16 %v308, %v308
        %v325 = vpack.c.bf16 %v309, %v309
        %v326 = vpack.c.bf16 %v310, %v310
        %v327 = vpack.c.bf16 %v311, %v311
        %v328 = vpack.c.bf16 %v312, %v312
        %v329 = vpack.c.bf16 %v313, %v313
        %v330 = vld [vmem:[%s217] sm:$0xff]
        %v331 = vld [vmem:[%s217 + $0x8] sm:$0xff]
        %v332 = vld [vmem:[%s217 + $0x10] sm:$0xff]
        %v333 = vld [vmem:[%s217 + $0x18] sm:$0xff]
        %v334 = vld [vmem:[%s217 + $0x20] sm:$0xff]
        %v335 = vld [vmem:[%s217 + $0x28] sm:$0xff]
        %v336 = vld [vmem:[%s217 + $0x30] sm:$0xff]
        %v337 = vld [vmem:[%s217 + $0x38] sm:$0xff]
        %v338 = vld [vmem:[%s217 + $0x40] sm:$0xff]
        %v339 = vld [vmem:[%s217 + $0x48] sm:$0xff]
        %v340 = vld [vmem:[%s217 + $0x50] sm:$0xff]
        %v341 = vld [vmem:[%s217 + $0x58] sm:$0xff]
        %v342 = vld [vmem:[%s217 + $0x60] sm:$0xff]
        %v343 = vld [vmem:[%s217 + $0x68] sm:$0xff]
        %v344 = vld [vmem:[%s217 + $0x70] sm:$0xff]
        %v345 = vld [vmem:[%s217 + $0x78] sm:$0xff]
        %v346 = vld [vmem:[%s217 + $0x80] sm:$0xff]
        %v347 = vld [vmem:[%s217 + $0x88] sm:$0xff]
        %v348 = vld [vmem:[%s217 + $0x90] sm:$0xff]
        %v349 = vld [vmem:[%s217 + $0x98] sm:$0xff]
        %v350 = vld [vmem:[%s217 + $0xa0] sm:$0xff]
        %v351 = vld [vmem:[%s217 + $0xa8] sm:$0xff]
        %v352 = vld [vmem:[%s217 + $0xb0] sm:$0xff]
        %v353 = vld [vmem:[%s217 + $0xb8] sm:$0xff]
        %v354 = vld [vmem:[%s217 + $0xc0] sm:$0xff]
        %v355 = vld [vmem:[%s217 + $0xc8] sm:$0xff]
        %v356 = vld [vmem:[%s217 + $0xd0] sm:$0xff]
        %v357 = vld [vmem:[%s217 + $0xd8] sm:$0xff]
        %v358 = vld [vmem:[%s217 + $0xe0] sm:$0xff]
        %v359 = vld [vmem:[%s217 + $0xe8] sm:$0xff]
        %v360 = vld [vmem:[%s217 + $0xf0] sm:$0xff]
        %v361 = vld [vmem:[%s217 + $0xf8] sm:$0xff]
        %v362 = vld [vmem:[%s217 + $0x100] sm:$0xff]
        %v363 = vld [vmem:[%s217 + $0x108] sm:$0xff]
        %v364 = vld [vmem:[%s217 + $0x110] sm:$0xff]
        %v365 = vld [vmem:[%s217 + $0x118] sm:$0xff]
        %v366 = vld [vmem:[%s217 + $0x120] sm:$0xff]
        %v367 = vld [vmem:[%s217 + $0x128] sm:$0xff]
        %v368 = vld [vmem:[%s217 + $0x130] sm:$0xff]
        %v369 = vld [vmem:[%s217 + $0x138] sm:$0xff]
        %v370 = vld [vmem:[%s217 + $0x140] sm:$0xff]
        %v371 = vld [vmem:[%s217 + $0x148] sm:$0xff]
        %v372 = vld [vmem:[%s217 + $0x150] sm:$0xff]
        %v373 = vld [vmem:[%s217 + $0x158] sm:$0xff]
        %v374 = vld [vmem:[%s217 + $0x160] sm:$0xff]
        %v375 = vld [vmem:[%s217 + $0x168] sm:$0xff]
        %v376 = vld [vmem:[%s217 + $0x170] sm:$0xff]
        %v377 = vld [vmem:[%s217 + $0x178] sm:$0xff]
        %v378 = vld [vmem:[%s217 + $0x180] sm:$0xff]
        %v379 = vld [vmem:[%s217 + $0x188] sm:$0xff]
        %v380 = vld [vmem:[%s217 + $0x190] sm:$0xff]
        %v381 = vld [vmem:[%s217 + $0x198] sm:$0xff]
        %v382 = vld [vmem:[%s217 + $0x1a0] sm:$0xff]
        %v383 = vld [vmem:[%s217 + $0x1a8] sm:$0xff]
        %v384 = vld [vmem:[%s217 + $0x1b0] sm:$0xff]
        %v385 = vld [vmem:[%s217 + $0x1b8] sm:$0xff]
        %v386 = vld [vmem:[%s217 + $0x1c0] sm:$0xff]
        %v387 = vld [vmem:[%s217 + $0x1c8] sm:$0xff]
        %v388 = vld [vmem:[%s217 + $0x1d0] sm:$0xff]
        %v389 = vld [vmem:[%s217 + $0x1d8] sm:$0xff]
        %v390 = vld [vmem:[%s217 + $0x1e0] sm:$0xff]
        %v391 = vld [vmem:[%s217 + $0x1e8] sm:$0xff]
        %v392 = vld [vmem:[%s217 + $0x1f0] sm:$0xff]
        %v393 = vld [vmem:[%s217 + $0x1f8] sm:$0xff]
        %v394 = vld [vmem:[%s217 + $0x200] sm:$0xff]
        %v395 = vld [vmem:[%s217 + $0x208] sm:$0xff]
        %v396 = vld [vmem:[%s217 + $0x210] sm:$0xff]
        %v397 = vld [vmem:[%s217 + $0x218] sm:$0xff]
        %v398 = vld [vmem:[%s217 + $0x220] sm:$0xff]
        %v399 = vld [vmem:[%s217 + $0x228] sm:$0xff]
        %v400 = vld [vmem:[%s217 + $0x230] sm:$0xff]
        %v401 = vld [vmem:[%s217 + $0x238] sm:$0xff]
        %v402 = vld [vmem:[%s217 + $0x240] sm:$0xff]
        %v403 = vld [vmem:[%s217 + $0x248] sm:$0xff]
        %v404 = vld [vmem:[%s217 + $0x250] sm:$0xff]
        %v405 = vld [vmem:[%s217 + $0x258] sm:$0xff]
        %v406 = vld [vmem:[%s217 + $0x260] sm:$0xff]
        %v407 = vld [vmem:[%s217 + $0x268] sm:$0xff]
        %v408 = vld [vmem:[%s217 + $0x270] sm:$0xff]
        %v409 = vld [vmem:[%s217 + $0x278] sm:$0xff]
        %v410 = vld [vmem:[%s217 + $0x280] sm:$0xff]
        %v411 = vld [vmem:[%s217 + $0x288] sm:$0xff]
        %v412 = vld [vmem:[%s217 + $0x290] sm:$0xff]
        %v413 = vld [vmem:[%s217 + $0x298] sm:$0xff]
        %v414 = vld [vmem:[%s217 + $0x2a0] sm:$0xff]
        %v415 = vld [vmem:[%s217 + $0x2a8] sm:$0xff]
        %v416 = vld [vmem:[%s217 + $0x2b0] sm:$0xff]
        %v417 = vld [vmem:[%s217 + $0x2b8] sm:$0xff]
        %v418 = vld [vmem:[%s217 + $0x2c0] sm:$0xff]
        %v419 = vld [vmem:[%s217 + $0x2c8] sm:$0xff]
        %v420 = vld [vmem:[%s217 + $0x2d0] sm:$0xff]
        %v421 = vld [vmem:[%s217 + $0x2d8] sm:$0xff]
        %v422 = vld [vmem:[%s217 + $0x2e0] sm:$0xff]
        %v423 = vld [vmem:[%s217 + $0x2e8] sm:$0xff]
        %v424 = vld [vmem:[%s217 + $0x2f0] sm:$0xff]
        %v425 = vld [vmem:[%s217 + $0x2f8] sm:$0xff]
        %v426 = vld [vmem:[%s217 + $0x300] sm:$0xff]
        %v427 = vld [vmem:[%s217 + $0x308] sm:$0xff]
        %v428 = vld [vmem:[%s217 + $0x310] sm:$0xff]
        %v429 = vld [vmem:[%s217 + $0x318] sm:$0xff]
        %v430 = vld [vmem:[%s217 + $0x320] sm:$0xff]
        %v431 = vld [vmem:[%s217 + $0x328] sm:$0xff]
        %v432 = vld [vmem:[%s217 + $0x330] sm:$0xff]
        %v433 = vld [vmem:[%s217 + $0x338] sm:$0xff]
        %v434 = vld [vmem:[%s217 + $0x340] sm:$0xff]
        %v435 = vld [vmem:[%s217 + $0x348] sm:$0xff]
        %v436 = vld [vmem:[%s217 + $0x350] sm:$0xff]
        %v437 = vld [vmem:[%s217 + $0x358] sm:$0xff]
        %v438 = vld [vmem:[%s217 + $0x360] sm:$0xff]
        %v439 = vld [vmem:[%s217 + $0x368] sm:$0xff]
        %v440 = vld [vmem:[%s217 + $0x370] sm:$0xff]
        %v441 = vld [vmem:[%s217 + $0x378] sm:$0xff]
        %v442 = vld [vmem:[%s217 + $0x380] sm:$0xff]
        %v443 = vld [vmem:[%s217 + $0x388] sm:$0xff]
        %v444 = vld [vmem:[%s217 + $0x390] sm:$0xff]
        %v445 = vld [vmem:[%s217 + $0x398] sm:$0xff]
        %v446 = vld [vmem:[%s217 + $0x3a0] sm:$0xff]
        %v447 = vld [vmem:[%s217 + $0x3a8] sm:$0xff]
        %v448 = vld [vmem:[%s217 + $0x3b0] sm:$0xff]
        %v449 = vld [vmem:[%s217 + $0x3b8] sm:$0xff]
        %v450 = vld [vmem:[%s217 + $0x3c0] sm:$0xff]
        %v451 = vld [vmem:[%s217 + $0x3c8] sm:$0xff]
        %v452 = vld [vmem:[%s217 + $0x3d0] sm:$0xff]
        %v453 = vld [vmem:[%s217 + $0x3d8] sm:$0xff]
        %v454 = vld [vmem:[%s217 + $0x3e0] sm:$0xff]
        %v455 = vld [vmem:[%s217 + $0x3e8] sm:$0xff]
        %v456 = vld [vmem:[%s217 + $0x3f0] sm:$0xff]
        %v457 = vld [vmem:[%s217 + $0x3f8] sm:$0xff]
        %v586 = vunpack.c.l.b16 %v330
        %v587 = vunpack.c.h.b16 %v330
        %v588 = vunpack.c.l.b16 %v331
        %v589 = vunpack.c.h.b16 %v331
        %v590 = vunpack.c.l.b16 %v332
        %v591 = vunpack.c.h.b16 %v332
        %v592 = vunpack.c.l.b16 %v333
        %v593 = vunpack.c.h.b16 %v333
        %v594 = vunpack.c.l.b16 %v334
        %v595 = vunpack.c.h.b16 %v334
        %v596 = vunpack.c.l.b16 %v335
        %v597 = vunpack.c.h.b16 %v335
        %v598 = vunpack.c.l.b16 %v336
        %v599 = vunpack.c.h.b16 %v336
        %v600 = vunpack.c.l.b16 %v337
        %v601 = vunpack.c.h.b16 %v337
        %v602 = vunpack.c.l.b16 %v338
        %v603 = vunpack.c.h.b16 %v338
        %v604 = vunpack.c.l.b16 %v339
        %v605 = vunpack.c.h.b16 %v339
        %v606 = vunpack.c.l.b16 %v340
        %v607 = vunpack.c.h.b16 %v340
        %v608 = vunpack.c.l.b16 %v341
        %v609 = vunpack.c.h.b16 %v341
        %v610 = vunpack.c.l.b16 %v342
        %v611 = vunpack.c.h.b16 %v342
        %v612 = vunpack.c.l.b16 %v343
        %v613 = vunpack.c.h.b16 %v343
        %v614 = vunpack.c.l.b16 %v344
        %v615 = vunpack.c.h.b16 %v344
        %v616 = vunpack.c.l.b16 %v345
        %v617 = vunpack.c.h.b16 %v345
        %v618 = vunpack.c.l.b16 %v346
        %v619 = vunpack.c.h.b16 %v346
        %v620 = vunpack.c.l.b16 %v347
        %v621 = vunpack.c.h.b16 %v347
        %v622 = vunpack.c.l.b16 %v348
        %v623 = vunpack.c.h.b16 %v348
        %v624 = vunpack.c.l.b16 %v349
        %v625 = vunpack.c.h.b16 %v349
        %v626 = vunpack.c.l.b16 %v350
        %v627 = vunpack.c.h.b16 %v350
        %v628 = vunpack.c.l.b16 %v351
        %v629 = vunpack.c.h.b16 %v351
        %v630 = vunpack.c.l.b16 %v352
        %v631 = vunpack.c.h.b16 %v352
        %v632 = vunpack.c.l.b16 %v353
        %v633 = vunpack.c.h.b16 %v353
        %v634 = vunpack.c.l.b16 %v354
        %v635 = vunpack.c.h.b16 %v354
        %v636 = vunpack.c.l.b16 %v355
        %v637 = vunpack.c.h.b16 %v355
        %v638 = vunpack.c.l.b16 %v356
        %v639 = vunpack.c.h.b16 %v356
        %v640 = vunpack.c.l.b16 %v357
        %v641 = vunpack.c.h.b16 %v357
        %v642 = vunpack.c.l.b16 %v358
        %v643 = vunpack.c.h.b16 %v358
        %v644 = vunpack.c.l.b16 %v359
        %v645 = vunpack.c.h.b16 %v359
        %v646 = vunpack.c.l.b16 %v360
        %v647 = vunpack.c.h.b16 %v360
        %v648 = vunpack.c.l.b16 %v361
        %v649 = vunpack.c.h.b16 %v361
        %v650 = vunpack.c.l.b16 %v362
        %v651 = vunpack.c.h.b16 %v362
        %v652 = vunpack.c.l.b16 %v363
        %v653 = vunpack.c.h.b16 %v363
        %v654 = vunpack.c.l.b16 %v364
        %v655 = vunpack.c.h.b16 %v364
        %v656 = vunpack.c.l.b16 %v365
        %v657 = vunpack.c.h.b16 %v365
        %v658 = vunpack.c.l.b16 %v366
        %v659 = vunpack.c.h.b16 %v366
        %v660 = vunpack.c.l.b16 %v367
        %v661 = vunpack.c.h.b16 %v367
        %v662 = vunpack.c.l.b16 %v368
        %v663 = vunpack.c.h.b16 %v368
        %v664 = vunpack.c.l.b16 %v369
        %v665 = vunpack.c.h.b16 %v369
        %v666 = vunpack.c.l.b16 %v370
        %v667 = vunpack.c.h.b16 %v370
        %v668 = vunpack.c.l.b16 %v371
        %v669 = vunpack.c.h.b16 %v371
        %v670 = vunpack.c.l.b16 %v372
        %v671 = vunpack.c.h.b16 %v372
        %v672 = vunpack.c.l.b16 %v373
        %v673 = vunpack.c.h.b16 %v373
        %v674 = vunpack.c.l.b16 %v374
        %v675 = vunpack.c.h.b16 %v374
        %v676 = vunpack.c.l.b16 %v375
        %v677 = vunpack.c.h.b16 %v375
        %v678 = vunpack.c.l.b16 %v376
        %v679 = vunpack.c.h.b16 %v376
        %v680 = vunpack.c.l.b16 %v377
        %v681 = vunpack.c.h.b16 %v377
        %v682 = vunpack.c.l.b16 %v378
        %v683 = vunpack.c.h.b16 %v378
        %v684 = vunpack.c.l.b16 %v379
        %v685 = vunpack.c.h.b16 %v379
        %v686 = vunpack.c.l.b16 %v380
        %v687 = vunpack.c.h.b16 %v380
        %v688 = vunpack.c.l.b16 %v381
        %v689 = vunpack.c.h.b16 %v381
        %v690 = vunpack.c.l.b16 %v382
        %v691 = vunpack.c.h.b16 %v382
        %v692 = vunpack.c.l.b16 %v383
        %v693 = vunpack.c.h.b16 %v383
        %v694 = vunpack.c.l.b16 %v384
        %v695 = vunpack.c.h.b16 %v384
        %v696 = vunpack.c.l.b16 %v385
        %v697 = vunpack.c.h.b16 %v385
        %v698 = vunpack.c.l.b16 %v386
        %v699 = vunpack.c.h.b16 %v386
        %v700 = vunpack.c.l.b16 %v387
        %v701 = vunpack.c.h.b16 %v387
        %v702 = vunpack.c.l.b16 %v388
        %v703 = vunpack.c.h.b16 %v388
        %v704 = vunpack.c.l.b16 %v389
        %v705 = vunpack.c.h.b16 %v389
        %v706 = vunpack.c.l.b16 %v390
        %v707 = vunpack.c.h.b16 %v390
        %v708 = vunpack.c.l.b16 %v391
        %v709 = vunpack.c.h.b16 %v391
        %v710 = vunpack.c.l.b16 %v392
        %v711 = vunpack.c.h.b16 %v392
        %v712 = vunpack.c.l.b16 %v393
        %v713 = vunpack.c.h.b16 %v393
        %v714 = vunpack.c.l.b16 %v394
        %v715 = vunpack.c.h.b16 %v394
        %v716 = vunpack.c.l.b16 %v395
        %v717 = vunpack.c.h.b16 %v395
        %v718 = vunpack.c.l.b16 %v396
        %v719 = vunpack.c.h.b16 %v396
        %v720 = vunpack.c.l.b16 %v397
        %v721 = vunpack.c.h.b16 %v397
        %v722 = vunpack.c.l.b16 %v398
        %v723 = vunpack.c.h.b16 %v398
        %v724 = vunpack.c.l.b16 %v399
        %v725 = vunpack.c.h.b16 %v399
        %v726 = vunpack.c.l.b16 %v400
        %v727 = vunpack.c.h.b16 %v400
        %v728 = vunpack.c.l.b16 %v401
        %v729 = vunpack.c.h.b16 %v401
        %v730 = vunpack.c.l.b16 %v402
        %v731 = vunpack.c.h.b16 %v402
        %v732 = vunpack.c.l.b16 %v403
        %v733 = vunpack.c.h.b16 %v403
        %v734 = vunpack.c.l.b16 %v404
        %v735 = vunpack.c.h.b16 %v404
        %v736 = vunpack.c.l.b16 %v405
        %v737 = vunpack.c.h.b16 %v405
        %v738 = vunpack.c.l.b16 %v406
        %v739 = vunpack.c.h.b16 %v406
        %v740 = vunpack.c.l.b16 %v407
        %v741 = vunpack.c.h.b16 %v407
        %v742 = vunpack.c.l.b16 %v408
        %v743 = vunpack.c.h.b16 %v408
        %v744 = vunpack.c.l.b16 %v409
        %v745 = vunpack.c.h.b16 %v409
        %v746 = vunpack.c.l.b16 %v410
        %v747 = vunpack.c.h.b16 %v410
        %v748 = vunpack.c.l.b16 %v411
        %v749 = vunpack.c.h.b16 %v411
        %v750 = vunpack.c.l.b16 %v412
        %v751 = vunpack.c.h.b16 %v412
        %v752 = vunpack.c.l.b16 %v413
        %v753 = vunpack.c.h.b16 %v413
        %v754 = vunpack.c.l.b16 %v414
        %v755 = vunpack.c.h.b16 %v414
        %v756 = vunpack.c.l.b16 %v415
        %v757 = vunpack.c.h.b16 %v415
        %v758 = vunpack.c.l.b16 %v416
        %v759 = vunpack.c.h.b16 %v416
        %v760 = vunpack.c.l.b16 %v417
        %v761 = vunpack.c.h.b16 %v417
        %v762 = vunpack.c.l.b16 %v418
        %v763 = vunpack.c.h.b16 %v418
        %v764 = vunpack.c.l.b16 %v419
        %v765 = vunpack.c.h.b16 %v419
        %v766 = vunpack.c.l.b16 %v420
        %v767 = vunpack.c.h.b16 %v420
        %v768 = vunpack.c.l.b16 %v421
        %v769 = vunpack.c.h.b16 %v421
        %v770 = vunpack.c.l.b16 %v422
        %v771 = vunpack.c.h.b16 %v422
        %v772 = vunpack.c.l.b16 %v423
        %v773 = vunpack.c.h.b16 %v423
        %v774 = vunpack.c.l.b16 %v424
        %v775 = vunpack.c.h.b16 %v424
        %v776 = vunpack.c.l.b16 %v425
        %v777 = vunpack.c.h.b16 %v425
        %v778 = vunpack.c.l.b16 %v426
        %v779 = vunpack.c.h.b16 %v426
        %v780 = vunpack.c.l.b16 %v427
        %v781 = vunpack.c.h.b16 %v427
        %v782 = vunpack.c.l.b16 %v428
        %v783 = vunpack.c.h.b16 %v428
        %v784 = vunpack.c.l.b16 %v429
        %v785 = vunpack.c.h.b16 %v429
        %v786 = vunpack.c.l.b16 %v430
        %v787 = vunpack.c.h.b16 %v430
        %v788 = vunpack.c.l.b16 %v431
        %v789 = vunpack.c.h.b16 %v431
        %v790 = vunpack.c.l.b16 %v432
        %v791 = vunpack.c.h.b16 %v432
        %v792 = vunpack.c.l.b16 %v433
        %v793 = vunpack.c.h.b16 %v433
        %v794 = vunpack.c.l.b16 %v434
        %v795 = vunpack.c.h.b16 %v434
        %v796 = vunpack.c.l.b16 %v435
        %v797 = vunpack.c.h.b16 %v435
        %v798 = vunpack.c.l.b16 %v436
        %v799 = vunpack.c.h.b16 %v436
        %v800 = vunpack.c.l.b16 %v437
        %v801 = vunpack.c.h.b16 %v437
        %v802 = vunpack.c.l.b16 %v438
        %v803 = vunpack.c.h.b16 %v438
        %v804 = vunpack.c.l.b16 %v439
        %v805 = vunpack.c.h.b16 %v439
        %v806 = vunpack.c.l.b16 %v440
        %v807 = vunpack.c.h.b16 %v440
        %v808 = vunpack.c.l.b16 %v441
        %v809 = vunpack.c.h.b16 %v441
        %v810 = vunpack.c.l.b16 %v442
        %v811 = vunpack.c.h.b16 %v442
        %v812 = vunpack.c.l.b16 %v443
        %v813 = vunpack.c.h.b16 %v443
        %v814 = vunpack.c.l.b16 %v444
        %v815 = vunpack.c.h.b16 %v444
        %v816 = vunpack.c.l.b16 %v445
        %v817 = vunpack.c.h.b16 %v445
        %v818 = vunpack.c.l.b16 %v446
        %v819 = vunpack.c.h.b16 %v446
        %v820 = vunpack.c.l.b16 %v447
        %v821 = vunpack.c.h.b16 %v447
        %v822 = vunpack.c.l.b16 %v448
        %v823 = vunpack.c.h.b16 %v448
        %v824 = vunpack.c.l.b16 %v449
        %v825 = vunpack.c.h.b16 %v449
        %v826 = vunpack.c.l.b16 %v450
        %v827 = vunpack.c.h.b16 %v450
        %v828 = vunpack.c.l.b16 %v451
        %v829 = vunpack.c.h.b16 %v451
        %v830 = vunpack.c.l.b16 %v452
        %v831 = vunpack.c.h.b16 %v452
        %v832 = vunpack.c.l.b16 %v453
        %v833 = vunpack.c.h.b16 %v453
        %v834 = vunpack.c.l.b16 %v454
        %v835 = vunpack.c.h.b16 %v454
        %v836 = vunpack.c.l.b16 %v455
        %v837 = vunpack.c.h.b16 %v455
        %v838 = vunpack.c.l.b16 %v456
        %v839 = vunpack.c.h.b16 %v456
        %v840 = vunpack.c.l.b16 %v457
        %v841 = vunpack.c.h.b16 %v457
        %v842 = vpack.c.b16 %v588, %v586
        %v843 = vpack.c.b16 %v589, %v587
        %v844 = vpack.c.b16 %v592, %v590
        %v845 = vpack.c.b16 %v593, %v591
        %v846 = vpack.c.b16 %v596, %v594
        %v847 = vpack.c.b16 %v597, %v595
        %v848 = vpack.c.b16 %v600, %v598
        %v849 = vpack.c.b16 %v601, %v599
        %v850 = vpack.c.b16 %v604, %v602
        %v851 = vpack.c.b16 %v605, %v603
        %v852 = vpack.c.b16 %v608, %v606
        %v853 = vpack.c.b16 %v609, %v607
        %v854 = vpack.c.b16 %v612, %v610
        %v855 = vpack.c.b16 %v613, %v611
        %v856 = vpack.c.b16 %v616, %v614
        %v857 = vpack.c.b16 %v617, %v615
        %v858 = vpack.c.b16 %v620, %v618
        %v859 = vpack.c.b16 %v621, %v619
        %v860 = vpack.c.b16 %v624, %v622
        %v861 = vpack.c.b16 %v625, %v623
        %v862 = vpack.c.b16 %v628, %v626
        %v863 = vpack.c.b16 %v629, %v627
        %v864 = vpack.c.b16 %v632, %v630
        %v865 = vpack.c.b16 %v633, %v631
        %v866 = vpack.c.b16 %v636, %v634
        %v867 = vpack.c.b16 %v637, %v635
        %v868 = vpack.c.b16 %v640, %v638
        %v869 = vpack.c.b16 %v641, %v639
        %v870 = vpack.c.b16 %v644, %v642
        %v871 = vpack.c.b16 %v645, %v643
        %v872 = vpack.c.b16 %v648, %v646
        %v873 = vpack.c.b16 %v649, %v647
        %v874 = vpack.c.b16 %v652, %v650
        %v875 = vpack.c.b16 %v653, %v651
        %v876 = vpack.c.b16 %v656, %v654
        %v877 = vpack.c.b16 %v657, %v655
        %v878 = vpack.c.b16 %v660, %v658
        %v879 = vpack.c.b16 %v661, %v659
        %v880 = vpack.c.b16 %v664, %v662
        %v881 = vpack.c.b16 %v665, %v663
        %v882 = vpack.c.b16 %v668, %v666
        %v883 = vpack.c.b16 %v669, %v667
        %v884 = vpack.c.b16 %v672, %v670
        %v885 = vpack.c.b16 %v673, %v671
        %v886 = vpack.c.b16 %v676, %v674
        %v887 = vpack.c.b16 %v677, %v675
        %v888 = vpack.c.b16 %v680, %v678
        %v889 = vpack.c.b16 %v681, %v679
        %v890 = vpack.c.b16 %v684, %v682
        %v891 = vpack.c.b16 %v685, %v683
        %v892 = vpack.c.b16 %v688, %v686
        %v893 = vpack.c.b16 %v689, %v687
        %v894 = vpack.c.b16 %v692, %v690
        %v895 = vpack.c.b16 %v693, %v691
        %v896 = vpack.c.b16 %v696, %v694
        %v897 = vpack.c.b16 %v697, %v695
        %v898 = vpack.c.b16 %v700, %v698
        %v899 = vpack.c.b16 %v701, %v699
        %v900 = vpack.c.b16 %v704, %v702
        %v901 = vpack.c.b16 %v705, %v703
        %v902 = vpack.c.b16 %v708, %v706
        %v903 = vpack.c.b16 %v709, %v707
        %v904 = vpack.c.b16 %v712, %v710
        %v905 = vpack.c.b16 %v713, %v711
        %v906 = vpack.c.b16 %v716, %v714
        %v907 = vpack.c.b16 %v717, %v715
        %v908 = vpack.c.b16 %v720, %v718
        %v909 = vpack.c.b16 %v721, %v719
        %v910 = vpack.c.b16 %v724, %v722
        %v911 = vpack.c.b16 %v725, %v723
        %v912 = vpack.c.b16 %v728, %v726
        %v913 = vpack.c.b16 %v729, %v727
        %v914 = vpack.c.b16 %v732, %v730
        %v915 = vpack.c.b16 %v733, %v731
        %v916 = vpack.c.b16 %v736, %v734
        %v917 = vpack.c.b16 %v737, %v735
        %v918 = vpack.c.b16 %v740, %v738
        %v919 = vpack.c.b16 %v741, %v739
        %v920 = vpack.c.b16 %v744, %v742
        %v921 = vpack.c.b16 %v745, %v743
        %v922 = vpack.c.b16 %v748, %v746
        %v923 = vpack.c.b16 %v749, %v747
        %v924 = vpack.c.b16 %v752, %v750
        %v925 = vpack.c.b16 %v753, %v751
        %v926 = vpack.c.b16 %v756, %v754
        %v927 = vpack.c.b16 %v757, %v755
        %v928 = vpack.c.b16 %v760, %v758
        %v929 = vpack.c.b16 %v761, %v759
        %v930 = vpack.c.b16 %v764, %v762
        %v931 = vpack.c.b16 %v765, %v763
        %v932 = vpack.c.b16 %v768, %v766
        %v933 = vpack.c.b16 %v769, %v767
        %v934 = vpack.c.b16 %v772, %v770
        %v935 = vpack.c.b16 %v773, %v771
        %v936 = vpack.c.b16 %v776, %v774
        %v937 = vpack.c.b16 %v777, %v775
        %v938 = vpack.c.b16 %v780, %v778
        %v939 = vpack.c.b16 %v781, %v779
        %v940 = vpack.c.b16 %v784, %v782
        %v941 = vpack.c.b16 %v785, %v783
        %v942 = vpack.c.b16 %v788, %v786
        %v943 = vpack.c.b16 %v789, %v787
        %v944 = vpack.c.b16 %v792, %v790
        %v945 = vpack.c.b16 %v793, %v791
        %v946 = vpack.c.b16 %v796, %v794
        %v947 = vpack.c.b16 %v797, %v795
        %v948 = vpack.c.b16 %v800, %v798
        %v949 = vpack.c.b16 %v801, %v799
        %v950 = vpack.c.b16 %v804, %v802
        %v951 = vpack.c.b16 %v805, %v803
        %v952 = vpack.c.b16 %v808, %v806
        %v953 = vpack.c.b16 %v809, %v807
        %v954 = vpack.c.b16 %v812, %v810
        %v955 = vpack.c.b16 %v813, %v811
        %v956 = vpack.c.b16 %v816, %v814
        %v957 = vpack.c.b16 %v817, %v815
        %v958 = vpack.c.b16 %v820, %v818
        %v959 = vpack.c.b16 %v821, %v819
        %v960 = vpack.c.b16 %v824, %v822
        %v961 = vpack.c.b16 %v825, %v823
        %v962 = vpack.c.b16 %v828, %v826
        %v963 = vpack.c.b16 %v829, %v827
        %v964 = vpack.c.b16 %v832, %v830
        %v965 = vpack.c.b16 %v833, %v831
        %v966 = vpack.c.b16 %v836, %v834
        %v967 = vpack.c.b16 %v837, %v835
        %v968 = vpack.c.b16 %v840, %v838
        %v969 = vpack.c.b16 %v841, %v839
        %1098 = vmatpush.bf16.msra.mxu0 %v856
        %1099 = vmatpush.bf16.msra.mxu0 %v854
        %1100 = vmatpush.bf16.msra.mxu0 %v852
        %1101 = vmatpush.bf16.msra.mxu0 %v850
        %1102 = vmatpush.bf16.msra.mxu0 %v848
        %1103 = vmatpush.bf16.msra.mxu0 %v846
        %1104 = vmatpush.bf16.msra.mxu0 %v844
        %1105 = vmatpush.bf16.msra.mxu0 %v842
        %1106 = vmatmul.bf16.gmra.mxu0 %v322
        %v1107 = vpop.f32.mrf.mxu0
        %v1108 = vadd.f32 0.0, %v1107
        %v1109 = vpop.f32.mrf.mxu0
        %1110 = vdwg.mxu0
        %1111 = vmatpush.bf16.msra.mxu0 %v872
        %1112 = vmatpush.bf16.msra.mxu0 %v870
        %1113 = vmatpush.bf16.msra.mxu0 %v868
        %1114 = vmatpush.bf16.msra.mxu0 %v866
        %1115 = vmatpush.bf16.msra.mxu0 %v864
        %1116 = vmatpush.bf16.msra.mxu0 %v862
        %1117 = vmatpush.bf16.msra.mxu0 %v860
        %1118 = vmatpush.bf16.msra.mxu0 %v858
        %1119 = vmatmul.bf16.gmra.mxu0 %v323
        %v1120 = vpop.f32.mrf.mxu0
        %v1121 = vadd.f32 %v1108, %v1120
        %v1122 = vpop.f32.mrf.mxu0
        %1123 = vdwg.mxu0
        %1124 = vmatpush.bf16.msra.mxu0 %v888
        %1125 = vmatpush.bf16.msra.mxu0 %v886
        %1126 = vmatpush.bf16.msra.mxu0 %v884
        %1127 = vmatpush.bf16.msra.mxu0 %v882
        %1128 = vmatpush.bf16.msra.mxu0 %v880
        %1129 = vmatpush.bf16.msra.mxu0 %v878
        %1130 = vmatpush.bf16.msra.mxu0 %v876
        %1131 = vmatpush.bf16.msra.mxu0 %v874
        %1132 = vmatmul.bf16.gmra.mxu0 %v324
        %v1133 = vpop.f32.mrf.mxu0
        %v1134 = vadd.f32 %v1121, %v1133
        %v1135 = vpop.f32.mrf.mxu0
        %1136 = vdwg.mxu0
        %1137 = vmatpush.bf16.msra.mxu0 %v904
        %1138 = vmatpush.bf16.msra.mxu0 %v902
        %1139 = vmatpush.bf16.msra.mxu0 %v900
        %1140 = vmatpush.bf16.msra.mxu0 %v898
        %1141 = vmatpush.bf16.msra.mxu0 %v896
        %1142 = vmatpush.bf16.msra.mxu0 %v894
        %1143 = vmatpush.bf16.msra.mxu0 %v892
        %1144 = vmatpush.bf16.msra.mxu0 %v890
        %1145 = vmatmul.bf16.gmra.mxu0 %v325
        %v1146 = vpop.f32.mrf.mxu0
        %v1147 = vadd.f32 %v1134, %v1146
        %v1148 = vpop.f32.mrf.mxu0
        %1149 = vdwg.mxu0
        %1150 = vmatpush.bf16.msra.mxu0 %v920
        %1151 = vmatpush.bf16.msra.mxu0 %v918
        %1152 = vmatpush.bf16.msra.mxu0 %v916
        %1153 = vmatpush.bf16.msra.mxu0 %v914
        %1154 = vmatpush.bf16.msra.mxu0 %v912
        %1155 = vmatpush.bf16.msra.mxu0 %v910
        %1156 = vmatpush.bf16.msra.mxu0 %v908
        %1157 = vmatpush.bf16.msra.mxu0 %v906
        %1158 = vmatmul.bf16.gmra.mxu0 %v326
        %v1159 = vpop.f32.mrf.mxu0
        %v1160 = vadd.f32 %v1147, %v1159
        %v1161 = vpop.f32.mrf.mxu0
        %1162 = vdwg.mxu0
        %1163 = vmatpush.bf16.msra.mxu0 %v936
        %1164 = vmatpush.bf16.msra.mxu0 %v934
        %1165 = vmatpush.bf16.msra.mxu0 %v932
        %1166 = vmatpush.bf16.msra.mxu0 %v930
        %1167 = vmatpush.bf16.msra.mxu0 %v928
        %1168 = vmatpush.bf16.msra.mxu0 %v926
        %1169 = vmatpush.bf16.msra.mxu0 %v924
        %1170 = vmatpush.bf16.msra.mxu0 %v922
        %1171 = vmatmul.bf16.gmra.mxu0 %v327
        %v1172 = vpop.f32.mrf.mxu0
        %v1173 = vadd.f32 %v1160, %v1172
        %v1174 = vpop.f32.mrf.mxu0
        %1175 = vdwg.mxu0
        %1176 = vmatpush.bf16.msra.mxu0 %v952
        %1177 = vmatpush.bf16.msra.mxu0 %v950
        %1178 = vmatpush.bf16.msra.mxu0 %v948
        %1179 = vmatpush.bf16.msra.mxu0 %v946
        %1180 = vmatpush.bf16.msra.mxu0 %v944
        %1181 = vmatpush.bf16.msra.mxu0 %v942
        %1182 = vmatpush.bf16.msra.mxu0 %v940
        %1183 = vmatpush.bf16.msra.mxu0 %v938
        %1184 = vmatmul.bf16.gmra.mxu0 %v328
        %v1185 = vpop.f32.mrf.mxu0
        %v1186 = vadd.f32 %v1173, %v1185
        %v1187 = vpop.f32.mrf.mxu0
        %1188 = vdwg.mxu0
        %1189 = vmatpush.bf16.msra.mxu0 %v968
        %1190 = vmatpush.bf16.msra.mxu0 %v966
        %1191 = vmatpush.bf16.msra.mxu0 %v964
        %1192 = vmatpush.bf16.msra.mxu0 %v962
        %1193 = vmatpush.bf16.msra.mxu0 %v960
        %1194 = vmatpush.bf16.msra.mxu0 %v958
        %1195 = vmatpush.bf16.msra.mxu0 %v956
        %1196 = vmatpush.bf16.msra.mxu0 %v954
        %1197 = vmatmul.bf16.gmra.mxu0 %v329
        %v1198 = vpop.f32.mrf.mxu0
        %v1199 = vadd.f32 %v1186, %v1198
        %v1200 = vpop.f32.mrf.mxu0
        %1201 = vdwg.mxu0
        %1202 = vmatpush.bf16.msra.mxu0 %v857
        %1203 = vmatpush.bf16.msra.mxu0 %v855
        %1204 = vmatpush.bf16.msra.mxu0 %v853
        %1205 = vmatpush.bf16.msra.mxu0 %v851
        %1206 = vmatpush.bf16.msra.mxu0 %v849
        %1207 = vmatpush.bf16.msra.mxu0 %v847
        %1208 = vmatpush.bf16.msra.mxu0 %v845
        %1209 = vmatpush.bf16.msra.mxu0 %v843
        %1210 = vmatmul.bf16.gmra.mxu0 %v322
        %v1211 = vpop.f32.mrf.mxu0
        %v1212 = vadd.f32 0.0, %v1211
        %v1213 = vpop.f32.mrf.mxu0
        %1214 = vdwg.mxu0
        %1215 = vmatpush.bf16.msra.mxu0 %v873
        %1216 = vmatpush.bf16.msra.mxu0 %v871
        %1217 = vmatpush.bf16.msra.mxu0 %v869
        %1218 = vmatpush.bf16.msra.mxu0 %v867
        %1219 = vmatpush.bf16.msra.mxu0 %v865
        %1220 = vmatpush.bf16.msra.mxu0 %v863
        %1221 = vmatpush.bf16.msra.mxu0 %v861
        %1222 = vmatpush.bf16.msra.mxu0 %v859
        %1223 = vmatmul.bf16.gmra.mxu0 %v323
        %v1224 = vpop.f32.mrf.mxu0
        %v1225 = vadd.f32 %v1212, %v1224
        %v1226 = vpop.f32.mrf.mxu0
        %1227 = vdwg.mxu0
        %1228 = vmatpush.bf16.msra.mxu0 %v889
        %1229 = vmatpush.bf16.msra.mxu0 %v887
        %1230 = vmatpush.bf16.msra.mxu0 %v885
        %1231 = vmatpush.bf16.msra.mxu0 %v883
        %1232 = vmatpush.bf16.msra.mxu0 %v881
        %1233 = vmatpush.bf16.msra.mxu0 %v879
        %1234 = vmatpush.bf16.msra.mxu0 %v877
        %1235 = vmatpush.bf16.msra.mxu0 %v875
        %1236 = vmatmul.bf16.gmra.mxu0 %v324
        %v1237 = vpop.f32.mrf.mxu0
        %v1238 = vadd.f32 %v1225, %v1237
        %v1239 = vpop.f32.mrf.mxu0
        %1240 = vdwg.mxu0
        %1241 = vmatpush.bf16.msra.mxu0 %v905
        %1242 = vmatpush.bf16.msra.mxu0 %v903
        %1243 = vmatpush.bf16.msra.mxu0 %v901
        %1244 = vmatpush.bf16.msra.mxu0 %v899
        %1245 = vmatpush.bf16.msra.mxu0 %v897
        %1246 = vmatpush.bf16.msra.mxu0 %v895
        %1247 = vmatpush.bf16.msra.mxu0 %v893
        %1248 = vmatpush.bf16.msra.mxu0 %v891
        %1249 = vmatmul.bf16.gmra.mxu0 %v325
        %v1250 = vpop.f32.mrf.mxu0
        %v1251 = vadd.f32 %v1238, %v1250
        %v1252 = vpop.f32.mrf.mxu0
        %1253 = vdwg.mxu0
        %1254 = vmatpush.bf16.msra.mxu0 %v921
        %1255 = vmatpush.bf16.msra.mxu0 %v919
        %1256 = vmatpush.bf16.msra.mxu0 %v917
        %1257 = vmatpush.bf16.msra.mxu0 %v915
        %1258 = vmatpush.bf16.msra.mxu0 %v913
        %1259 = vmatpush.bf16.msra.mxu0 %v911
        %1260 = vmatpush.bf16.msra.mxu0 %v909
        %1261 = vmatpush.bf16.msra.mxu0 %v907
        %1262 = vmatmul.bf16.gmra.mxu0 %v326
        %v1263 = vpop.f32.mrf.mxu0
        %v1264 = vadd.f32 %v1251, %v1263
        %v1265 = vpop.f32.mrf.mxu0
        %1266 = vdwg.mxu0
        %1267 = vmatpush.bf16.msra.mxu0 %v937
        %1268 = vmatpush.bf16.msra.mxu0 %v935
        %1269 = vmatpush.bf16.msra.mxu0 %v933
        %1270 = vmatpush.bf16.msra.mxu0 %v931
        %1271 = vmatpush.bf16.msra.mxu0 %v929
        %1272 = vmatpush.bf16.msra.mxu0 %v927
        %1273 = vmatpush.bf16.msra.mxu0 %v925
        %1274 = vmatpush.bf16.msra.mxu0 %v923
        %1275 = vmatmul.bf16.gmra.mxu0 %v327
        %v1276 = vpop.f32.mrf.mxu0
        %v1277 = vadd.f32 %v1264, %v1276
        %v1278 = vpop.f32.mrf.mxu0
        %1279 = vdwg.mxu0
        %1280 = vmatpush.bf16.msra.mxu0 %v953
        %1281 = vmatpush.bf16.msra.mxu0 %v951
        %1282 = vmatpush.bf16.msra.mxu0 %v949
        %1283 = vmatpush.bf16.msra.mxu0 %v947
        %1284 = vmatpush.bf16.msra.mxu0 %v945
        %1285 = vmatpush.bf16.msra.mxu0 %v943
        %1286 = vmatpush.bf16.msra.mxu0 %v941
        %1287 = vmatpush.bf16.msra.mxu0 %v939
        %1288 = vmatmul.bf16.gmra.mxu0 %v328
        %v1289 = vpop.f32.mrf.mxu0
        %v1290 = vadd.f32 %v1277, %v1289
        %v1291 = vpop.f32.mrf.mxu0
        %1292 = vdwg.mxu0
        %1293 = vmatpush.bf16.msra.mxu0 %v969
        %1294 = vmatpush.bf16.msra.mxu0 %v967
        %1295 = vmatpush.bf16.msra.mxu0 %v965
        %1296 = vmatpush.bf16.msra.mxu0 %v963
        %1297 = vmatpush.bf16.msra.mxu0 %v961
        %1298 = vmatpush.bf16.msra.mxu0 %v959
        %1299 = vmatpush.bf16.msra.mxu0 %v957
        %1300 = vmatpush.bf16.msra.mxu0 %v955
        %1301 = vmatmul.bf16.gmra.mxu0 %v329
        %v1302 = vpop.f32.mrf.mxu0
        %v1303 = vadd.f32 %v1290, %v1302
        %v1304 = vpop.f32.mrf.mxu0
        %1305 = vdwg.mxu0
        %v1308 = vrot.slane %v1303, 4
        %vm1309 = vcmask 1043456
        %v1310 = vsel %vm1309, %v1199, %v1308
        %v1312 = vadd.f32 %v290, %v1310
        %1313 = vst [vmem:[#allocation2] sm:$0xff] %v1312
        // Predicated region
        $region41: #{byol_forward.4} parent=31 // pred_check
          %p1314 = pneg %p285
        $region42: #{byol_forward.4} parent=31 // pred_check_branch
          %1316 = sbr.rel (%p1314) target = $region44
        $region43: #{byol_forward.4} parent=31 // pred_region
          %v1317 = vld [vmem:[#allocation2] sm:$0xff]
          %v1318 = vld [vmem:[%s273] sm:$0x3]
          %v1320 = vperm.slane %v1318, 0
          %v1321 = vperm.slane %v1318, 1
          %v1322 = vrot.slane %v1321, 4
          %v1323 = vsel %vm1309, %v1320, %v1322
          %v1325 = vadd.f32 %v1317, %v1323
          %1327 = vst [vmem:[#allocation1] ss:$2 sm:$0xff] %v1325
          %v1328 = vld.sshfl [vmem:[#allocation1] sm:$0xff pattern:$0x75316420]
          %v1329 = vld.sshfl [vmem:[#allocation1 + $0x8] sm:$0xff pattern:$0x75316420]
          %v1332 = vpack.c.bf16 %v1329, %v1328
          %v1334 = vrot.slane %v1332, 2
          %vm1335 = vcmask 1041408
          %v1338 = vsel %vm1335, %v1332, %v1334
          %1340 = vst [vmem:[%s283] sm:$0xf] %v1338
        $region44: #{byol_forward.4} parent=31 // pred_fallthru
          _
        %s1341 = smul.u32 2, %s23
        %p1342 = scmp.lt.s32.totalorder %s22, 0
        %s1343 = scalar_select %p1342, %s22, 0
        %p1344 = scmp.lt.s32.totalorder %s1341, 3
        %s1345 = scalar_select %p1344, %s1341, 3
        %s1346 = smul.addr %s1343, 4
        %s1347 = sadd.s32 %s1345, %s1346
        %s1348 = smul.addr %s1347, 2
        %s1349 = scalar_lea.vmem %s3, %s1348
        // Predicated region
        $region45: #{byol_forward.4} parent=31 // pred_check
          %p1350 = pneg %p138
        $region46: #{byol_forward.4} parent=31 // pred_check_branch
          %1352 = sbr.rel (%p1350) target = $region48
        $region47: #{byol_forward.4} parent=31 // pred_region
          %s1353 = smul.u32 2, %s23
        $region48: #{byol_forward.4} parent=31 // pred_fallthru
          _
      $region32: #{byol_forward.4} parent=5 // pred_fallthru
        _
      %p1354 = scmp.le.s32.totalorder 2, %s12
      // Predicated region
      $region49: #{byol_forward.4} parent=5 // pred_check
        %p1355 = pneg %p1354
      $region50: #{byol_forward.4} parent=5 // pred_check_branch
        %1357 = sbr.rel (%p1355) target = $region52
      $region51: #{byol_forward.4} parent=5 // pred_region
        %s1358 = ssub.s32 %s12, 2
        // Predicated region
        $region53: #{byol_forward.4} parent=51 // pred_check
          %p1359 = pneg %p144
        $region54: #{byol_forward.4} parent=51 // pred_check_branch
          %1361 = sbr.rel (%p1359) target = $region56
        $region55: #{byol_forward.4} parent=51 // pred_region
          %s1362 = smul.u32 2, %s26
          %p1363 = scmp.lt.s32.totalorder %s25, 0
          %s1364 = scalar_select %p1363, %s25, 0
          %p1365 = scmp.lt.s32.totalorder %s1362, 3
          %s1366 = scalar_select %p1365, %s1362, 3
          %s1367 = smul.addr %s1364, 4
          %s1368 = sadd.s32 %s1366, %s1367
          %s1369 = smul.addr %s1368, 2
          %s1370 = scalar_lea.vmem %s3, %s1369
        $region56: #{byol_forward.4} parent=51 // pred_fallthru
          _
      $region52: #{byol_forward.4} parent=5 // pred_fallthru
        _
    $region6: #{byol_forward.4} parent=1 // loop_footer
      %s16 = sadd.s32 1, %s12
    $region7: #{byol_forward.4} parent=1 // loop_footer_branch
      %11 = sbr.rel target = $region3
    $region8: #{byol_forward.4} parent=1 // loop_exit
      _
    %1371 = vsyncpa [#allocation4], 1
    %s1372 = scalar_lea.sflag [#allocation4], 1
    %1373 = vsyncpa %s1372, 1

</llo_original>
